<compile_context>
chip_gen: v6e
topology: v6e:2x2x1
jax: 0.10.0
libtpu: 0.0.40
codegen_flags: <defaults>
</compile_context>

<pallas_src>
import functools

import jax
import jax.numpy as jnp
import numpy as np
from jax import lax
from jax.experimental import pallas as pl
from jax.experimental.pallas import tpu as pltpu


# ----------------------------- small helpers -------------------------------

def _sigmoid(x):
    return 1.0 / (1.0 + jnp.exp(-x))


def _silu(x):
    return x * _sigmoid(x)


_VMEM = pl.BlockSpec(memory_space=pltpu.MemorySpace.VMEM)


def _align8(n):
    return ((n + 7) // 8) * 8


def _slab_layout(H, Fn, K):
    """Row offsets (8-aligned) of each weight piece inside the packed slab."""
    pieces = [('wrb', K + 1),             # [we_re ; be1]
              ('we2', H),                 # second edge-MLP weight
              ('vec', 4),                 # rows: be2 / watt^T / batt / bn2
              ('node', 2 * H + Fn + 1),   # [wn_h ; wn_agg ; wn_na ; bn1]
              ('wn2', H)]                 # second node-MLP weight
    offs, r = {}, 0
    for name, n in pieces:
        r = _align8(r)
        offs[name] = r
        r += n
    return offs, _align8(r)


# --------------------------- parameter packing ------------------------------

def pack_params(params, cfg):
    """Pack per-graph/per-layer weights into the slabs the fused kernel streams."""
    G, L, H = cfg['n_graphs'], cfg['n_layers'], cfg['hidden_nf']
    Fn, K = cfg['in_node_nf'], 1 + cfg['in_edge_nf']
    offs, R = _slab_layout(H, Fn, K)

    wproj = np.zeros((G, L, H, 2 * H), np.float32)   # [we_hr | we_hc]
    wslab = np.zeros((G, L, R, H), np.float32)
    Rn = _align8(2 * H + 2)
    ndslab = np.zeros((G, Rn, H), np.float32)

    for g in range(G):
        lp = {k: np.asarray(v) for k, v in params['gcl'][g].items()}
        for l in range(L):
            wproj[g, l] = np.concatenate([lp['we_hr'][l], lp['we_hc'][l]], axis=1)
            o = offs['wrb']
            wslab[g, l, o:o + K + 1] = np.concatenate(
                [lp['we_re'][l], lp['be1'][l]], axis=0)
            o = offs['we2']
            wslab[g, l, o:o + H] = lp['we2'][l]
            o = offs['vec']
            wslab[g, l, o + 0] = lp['be2'][l][0]
            wslab[g, l, o + 1] = lp['watt'][l][:, 0]                 # watt^T
            wslab[g, l, o + 2] = np.full((H,), lp['batt'][l][0, 0], np.float32)
            wslab[g, l, o + 3] = lp['bn2'][l][0]
            o = offs['node']
            wslab[g, l, o:o + 2 * H + Fn + 1] = np.concatenate(
                [lp['wn_h'][l], lp['wn_agg'][l], lp['wn_na'][l], lp['bn1'][l]],
                axis=0)
            o = offs['wn2']
            wslab[g, l, o:o + H] = lp['wn2'][l]
        nd = {k: np.asarray(v) for k, v in params['node_dec'][g].items()}
        ndslab[g, 0:H] = nd['w1']
        ndslab[g, H:2 * H] = nd['w2']
        ndslab[g, 2 * H] = nd['b1'][0]
        ndslab[g, 2 * H + 1] = nd['b2'][0]

    return dict(wproj=jnp.asarray(wproj), wslab=jnp.asarray(wslab),
                ndslab=jnp.asarray(ndslab), offs=offs)


# ------------------------- fused all-graph kernel ---------------------------

def _fused_graph_kernel(n_node, K, Fn, H, offs,
                        rc_ref, rowT_ref, h0_ref, re_ref, emask_ref, nmask_ref,
                        embw_ref, embb_ref, wproj_ref, wslab_ref, ndslab_ref,
                        out_ref,
                        h_scr, gaug_scr, growT_scr, erhs_scr, nlhs_scr):
    """grid = (G, L).  Embedding + all E_GCL_mask layers + node_dec + pooling."""
    l = pl.program_id(1)
    L = pl.num_programs(1)
    N = h_scr.shape[0]
    E = gaug_scr.shape[0]
    W = 2 * N + K + 1                    # augmented gather width
    f32 = jnp.float32

    # ---- per-graph init (layer 0 of every graph) ----------------------------
    @pl.when(l == 0)
    def _init():
        # embedding: h = h0 @ Wemb + bemb
        h_scr[...] = (jnp.dot(h0_ref[...], embw_ref[...],
                              preferred_element_type=f32) + embb_ref[...])
        # augmented gather matrix [grow | gcol | radial,edge_attr | 1]
        row = rc_ref[:, 0:1]
        col = rc_ref[:, 1:2]
        iota = lax.broadcasted_iota(jnp.int32, (E, 2 * N), 1)
        gaug_scr[:, 0:2 * N] = ((iota == row) | (iota == col + N)).astype(f32)
        gaug_scr[:, 2 * N:2 * N + K] = re_ref[...]
        gaug_scr[:, 2 * N + K:W] = jnp.ones((E, 1), f32)
        # pre-transposed scatter one-hot (no per-layer transpose)
        niota = lax.broadcasted_iota(jnp.int32, (N, E), 0)
        growT_scr[...] = (niota == rowT_ref[...]).astype(f32)
        # graph-constant columns of the node-MLP LHS (node_attr and ones)
        nlhs_scr[:, 2 * H:2 * H + Fn] = h0_ref[...]
        nlhs_scr[:, 2 * H + Fn:2 * H + Fn + 1] = jnp.ones((N, 1), f32)

    h = h_scr[...]                       # [N, H]
    slab = wslab_ref                     # [R, H] per-layer slab

    # ---- edge MLP stage 1: merged projection + merged gather (one MXU pass)
    hp = jnp.dot(h, wproj_ref[...], preferred_element_type=f32)    # [N, 2H]
    erhs_scr[0:N, :] = hp[:, 0:H]                                  # h @ we_hr
    erhs_scr[N:2 * N, :] = hp[:, H:2 * H]                          # h @ we_hc
    erhs_scr[2 * N:W, :] = slab[offs['wrb']:offs['wrb'] + K + 1, :]  # we_re;be1
    e1 = _silu(jnp.dot(gaug_scr[...], erhs_scr[...],
                       preferred_element_type=f32))                # [E, H]

    # ---- edge MLP stage 2 + attention gate + edge masking --------------------
    we2 = slab[offs['we2']:offs['we2'] + H, :]
    be2 = slab[offs['vec'] + 0:offs['vec'] + 1, :]
    wattT = slab[offs['vec'] + 1:offs['vec'] + 2, :]
    batt = slab[offs['vec'] + 2:offs['vec'] + 3, 0:1]
    bn2 = slab[offs['vec'] + 3:offs['vec'] + 4, :]
    e2 = _silu(jnp.dot(e1, we2, preferred_element_type=f32) + be2)
    att = _sigmoid(jnp.sum(e2 * wattT, axis=1, keepdims=True) + batt)
    edge_feat = e2 * att * emask_ref[...]                          # [E, H]

    # ---- scatter-add over rows (pre-transposed one-hot, plain dot) ----------
    agg = jnp.dot(growT_scr[...], edge_feat, preferred_element_type=f32)  # [N,H]

    # ---- node MLP over [h | agg | node_attr | 1] in one MXU pass + residual -
    nlhs_scr[:, 0:H] = h
    nlhs_scr[:, H:2 * H] = agg
    wnode = slab[offs['node']:offs['node'] + 2 * H + Fn + 1, :]
    n1 = _silu(jnp.dot(nlhs_scr[...], wnode, preferred_element_type=f32))
    wn2 = slab[offs['wn2']:offs['wn2'] + H, :]
    h_new = h + jnp.dot(n1, wn2, preferred_element_type=f32) + bn2
    h_scr[...] = h_new

    # ---- per-graph finalize: node_dec MLP + mask + sum-pooling ---------------
    @pl.when(l == L - 1)
    def _finalize():
        nd = ndslab_ref
        d = _silu(jnp.dot(h_new, nd[0:H, :], preferred_element_type=f32)
                  + nd[2 * H:2 * H + 1, :])
        d = (jnp.dot(d, nd[H:2 * H, :], preferred_element_type=f32)
             + nd[2 * H + 1:2 * H + 2, :])
        d = d * nmask_ref[...]
        bsz = N // n_node
        ci = lax.broadcasted_iota(jnp.int32, (bsz, N), 1)
        lo = lax.broadcasted_iota(jnp.int32, (bsz, N), 0) * n_node
        pool = ((ci >= lo) & (ci < lo + n_node)).astype(f32)
        out_ref[...] = jnp.dot(pool, d, preferred_element_type=f32)


def run_fused_graphs(rc, rowT, h0, re, emask, nmask, emb_w, emb_b,
                     packed, n_node, cfg):
    G, L, H = cfg['n_graphs'], cfg['n_layers'], cfg['hidden_nf']
    _, N, Fn = h0.shape
    E = rc.shape[1]
    K = re.shape[2]
    bsz = N // n_node
    wproj, wslab, ndslab = packed['wproj'], packed['wslab'], packed['ndslab']
    R, Rn = wslab.shape[2], ndslab.shape[1]
    offs = packed['offs']
    W = 2 * N + K + 1

    def gmap(g, l):        # per-graph constants: re-DMA only when g changes
        return (g, 0, 0)

    def glmap(g, l):       # per-layer streamed slabs
        return (g, l, 0, 0)

    def fmap(g, l):        # shared weights: single DMA
        return (0, 0)

    in_specs = [
        pl.BlockSpec((None, E, 2), gmap),           # rc (row|col)
        pl.BlockSpec((None, 1, E), gmap),           # row transposed
        pl.BlockSpec((None, N, Fn), gmap),          # h0 / node_attr
        pl.BlockSpec((None, E, K), gmap),           # radial | edge_attr
        pl.BlockSpec((None, E, 1), gmap),           # edge_mask
        pl.BlockSpec((None, N, 1), gmap),           # node_mask
        pl.BlockSpec((Fn, H), fmap),                # embedding W
        pl.BlockSpec((1, H), fmap),                 # embedding b
        pl.BlockSpec((None, None, H, 2 * H), glmap),  # [we_hr|we_hc]
        pl.BlockSpec((None, None, R, H), glmap),      # packed layer slab
        pl.BlockSpec((None, Rn, H), gmap),            # node_dec slab
    ]

    kernel = functools.partial(_fused_graph_kernel, n_node, K, Fn, H, offs)
    return pl.pallas_call(
        kernel,
        out_shape=jax.ShapeDtypeStruct((G, bsz, H), jnp.float32),
        grid=(G, L),
        in_specs=in_specs,
        out_specs=pl.BlockSpec((None, bsz, H), gmap),
        scratch_shapes=[
            pltpu.VMEM((N, H), jnp.float32),        # h (carried across layers)
            pltpu.VMEM((E, W), jnp.float32),        # [grow|gcol|re|1]
            pltpu.VMEM((N, E), jnp.float32),        # grow^T (scatter)
            pltpu.VMEM((W, H), jnp.float32),        # edge-MLP stacked RHS
            pltpu.VMEM((N, 2 * H + Fn + 1), jnp.float32),  # node-MLP LHS
        ],
        compiler_params=pltpu.CompilerParams(
            dimension_semantics=("parallel", "arbitrary"),
            vmem_limit_bytes=32 * 1024 * 1024),
    )(rc, rowT, h0, re, emask, nmask, emb_w, emb_b, wproj, wslab, ndslab)


# ------------------------------ head kernel ---------------------------------

def _head_kernel(GH,
                 hf_ref, env_ref, ew1_ref, eb1_ref, ew2_ref, eb2_ref,
                 gw1_ref, gb1_ref, gw2_ref, gb2_ref, out_ref):
    """enviro_enc MLP + (implicit) concat + grand_dec MLP in one kernel."""
    f32 = jnp.float32
    env1 = _silu(jnp.dot(env_ref[...], ew1_ref[...],
                         preferred_element_type=f32) + eb1_ref[...])
    env_out = (jnp.dot(env1, ew2_ref[...], preferred_element_type=f32)
               + eb2_ref[...])
    # combined @ gw1 without materializing the concat: hf part (lane-dense
    # [bsz, G*H]) + enviro part, using a row-split of gw1.
    gw1 = gw1_ref[...]
    acc = (jnp.dot(hf_ref[...], gw1[0:GH, :], preferred_element_type=f32)
           + jnp.dot(env_out, gw1[GH:, :], preferred_element_type=f32)
           + gb1_ref[...])
    a1 = _silu(acc)
    out_ref[...] = (jnp.dot(a1, gw2_ref[...], preferred_element_type=f32)
                    + gb2_ref[...])


def run_head(hf_flat, enviro, pe, pg):
    bsz, GH = hf_flat.shape
    args = (hf_flat, enviro, pe['w1'], pe['b1'], pe['w2'], pe['b2'],
            pg['w1'], pg['b1'], pg['w2'], pg['b2'])
    return pl.pallas_call(
        functools.partial(_head_kernel, GH),
        out_shape=jax.ShapeDtypeStruct((bsz, 1), jnp.float32),
        in_specs=[_VMEM] * len(args),
        out_specs=_VMEM,
        compiler_params=pltpu.CompilerParams(
            vmem_limit_bytes=32 * 1024 * 1024),
    )(*args)


# ----------------------------- parameters ----------------------------------

def init_params(key, cfg):
    H, Fn, Fe = cfg['hidden_nf'], cfg['in_node_nf'], cfg['in_edge_nf']
    G, L, Ne = cfg['n_graphs'], cfg['n_layers'], cfg['n_enviro']
    keys = iter(jax.random.split(key, 4096))

    def w(shape, scale=0.1):
        return scale * jax.random.normal(next(keys), shape, dtype=jnp.float32)

    params = {'emb_w': w((Fn, H)), 'emb_b': w((1, H))}
    gcl = []
    for _ in range(G):
        gcl.append(dict(
            we_hr=w((L, H, H)), we_hc=w((L, H, H)), we_re=w((L, 1 + Fe, H)),
            be1=w((L, 1, H)), we2=w((L, H, H)), be2=w((L, 1, H)),
            watt=w((L, H, 1)), batt=w((L, 1, 1)),
            wn_h=w((L, H, H)), wn_agg=w((L, H, H)), wn_na=w((L, Fn, H)),
            bn1=w((L, 1, H)), wn2=w((L, H, H)), bn2=w((L, 1, H))))
    params['gcl'] = gcl
    params['node_dec'] = [dict(w1=w((H, H)), b1=w((1, H)),
                               w2=w((H, H)), b2=w((1, H))) for _ in range(G)]
    params['enviro'] = dict(w1=w((Ne, H)), b1=w((1, H)),
                            w2=w((H, H)), b2=w((1, H)))
    C = (G + 1) * H     # n_enviro != 0  ->  n_enviro_dim = 1
    params['grand'] = dict(w1=w((C, C)), b1=w((1, C)),
                           w2=w((C, 1)), b2=w((1, 1)))
    return params


# ----------------------------- model forward --------------------------------

def megnn_enviro_forward(params, h0, x, all_edges, all_edge_attr, node_masks,
                         edge_masks, n_nodes, enviro, cfg):
    G, H = cfg['n_graphs'], cfg['hidden_nf']
    n_node = int(n_nodes[0])
    assert all(int(n) == n_node for n in n_nodes), \
        "fused kernel assumes a uniform n_node across graphs"

    rc, rowT, re, em, nm = [], [], [], [], []
    for j in range(G):
        row = all_edges[j][0].astype(jnp.int32)
        col = all_edges[j][1].astype(jnp.int32)
        coord = x[j]
        diff = coord[row] - coord[col]
        radial = jnp.sum(diff * diff, axis=1, keepdims=True)        # [E, 1]
        rc.append(jnp.stack([row, col], axis=1))                    # [E, 2]
        rowT.append(row.reshape(1, -1))                             # [1, E]
        re.append(jnp.concatenate([radial, all_edge_attr[j]], axis=1))
        em.append(edge_masks[j])
        nm.append(node_masks[j])
    rc = jnp.stack(rc)
    rowT = jnp.stack(rowT)
    re = jnp.stack(re)
    em = jnp.stack(em)
    nm = jnp.stack(nm)

    packed = pack_params(params, cfg)
    hf_all = run_fused_graphs(rc, rowT, h0, re, em, nm,
                              params['emb_w'], params['emb_b'],
                              packed, n_node, cfg)                  # [G, bsz, H]
    bsz = hf_all.shape[1]
    hf_flat = jnp.transpose(hf_all, (1, 0, 2)).reshape(bsz, G * H)  # lane-dense
    pred = run_head(hf_flat, enviro, params['enviro'], params['grand'])
    return pred[:, 0]


# ----------------------------- pure-JAX reference ---------------------------

def ref_forward(params, h0, x, all_edges, all_edge_attr, node_masks, edge_masks,
                n_nodes, enviro, cfg):
    hf = []
    H = cfg['hidden_nf']
    for j in range(cfg['n_graphs']):
        h0j = h0[j]
        N = h0j.shape[0]
        row, col = all_edges[j][0], all_edges[j][1]
        coord = x[j]
        diff = coord[row] - coord[col]
        radial = jnp.sum(diff * diff, axis=1, keepdims=True)
        h = h0j @ params['emb_w'] + params['emb_b']
        lp = params['gcl'][j]
        for i in range(cfg['n_layers']):
            einp = jnp.concatenate([h[row], h[col], radial, all_edge_attr[j]],
                                   axis=1)
            W1 = jnp.concatenate([lp['we_hr'][i], lp['we_hc'][i],
                                  lp['we_re'][i]], axis=0)
            e1 = _silu(einp @ W1 + lp['be1'][i])
            e2 = _silu(e1 @ lp['we2'][i] + lp['be2'][i])
            att = _sigmoid(e2 @ lp['watt'][i] + lp['batt'][i])
            ef = e2 * att * edge_masks[j]
            agg = jnp.zeros((N, H), jnp.float32).at[row].add(ef)
            ninp = jnp.concatenate([h, agg, h0j], axis=1)
            Wn1 = jnp.concatenate([lp['wn_h'][i], lp['wn_agg'][i],
                                   lp['wn_na'][i]], axis=0)
            n1 = _silu(ninp @ Wn1 + lp['bn1'][i])
            h = h + (n1 @ lp['wn2'][i] + lp['bn2'][i])
        pd = params['node_dec'][j]
        d = _silu(h @ pd['w1'] + pd['b1']) @ pd['w2'] + pd['b2']
        d = d * node_masks[j]
        d = d.reshape(-1, n_nodes[j], H).sum(axis=1)
        hf.append(d)
    pe = params['enviro']
    hf.append(_silu(enviro @ pe['w1'] + pe['b1']) @ pe['w2'] + pe['b2'])
    combined = jnp.concatenate(hf, axis=1)
    pg = params['grand']
    pred = _silu(combined @ pg['w1'] + pg['b1']) @ pg['w2'] + pg['b2']
    return pred[:, 0]


# --------------------------------- main --------------------------------------

if __name__ == "__main__":
    cfg = dict(n_graphs=2, n_layers=3, hidden_nf=32, in_node_nf=5,
               in_edge_nf=2, n_enviro=3, batch=2)
    n_node = 4
    batch = cfg['batch']
    N = batch * n_node
    # fully-connected edges within each graph instance of the batch
    rows, cols = [], []
    for b in range(batch):
        for a in range(n_node):
            for c in range(n_node):
                if a != c:
                    rows.append(b * n_node + a)
                    cols.append(b * n_node + c)
    E = len(rows)   # 24

    key = jax.random.PRNGKey(0)
    k_par, k_h, k_x, k_ea, k_env = jax.random.split(key, 5)
    params = init_params(k_par, cfg)

    h0 = jax.random.normal(k_h, (cfg['n_graphs'], N, cfg['in_node_nf']),
                           dtype=jnp.float32)
    x = jax.random.normal(k_x, (cfg['n_graphs'], N, 3), dtype=jnp.float32)
    all_edge_attr = jax.random.normal(k_ea, (cfg['n_graphs'], E,
                                             cfg['in_edge_nf']),
                                      dtype=jnp.float32)
    enviro = jax.random.normal(k_env, (batch, cfg['n_enviro']),
                               dtype=jnp.float32)

    edges_jnp = jnp.array([rows, cols], dtype=jnp.int32)
    all_edges = [edges_jnp for _ in range(cfg['n_graphs'])]

    # mask out the last node of each batch instance
    nmask = np.ones((N, 1), np.float32)
    for b in range(batch):
        nmask[b * n_node + n_node - 1, 0] = 0.0
    node_mask = jnp.array(nmask)
    edge_mask = node_mask[jnp.array(rows)] * node_mask[jnp.array(cols)]
    node_masks = [node_mask for _ in range(cfg['n_graphs'])]
    edge_masks = [edge_mask for _ in range(cfg['n_graphs'])]
    n_nodes = [n_node for _ in range(cfg['n_graphs'])]

    out = megnn_enviro_forward(params, h0, x, all_edges, all_edge_attr,
                               node_masks, edge_masks, n_nodes, enviro, cfg)
    out = jax.block_until_ready(out)

    ref = ref_forward(params, h0, x, all_edges, all_edge_attr,
                      node_masks, edge_masks, n_nodes, enviro, cfg)
    np.testing.assert_allclose(np.asarray(out), np.asarray(ref),
                               rtol=1e-4, atol=1e-4)
    print("KERNEL_OK")
</pallas_src>

<mosaic_0001>
module attributes {stable_mosaic.version = 11 : i64} {
  func.func @_fused_graph_kernel(%arg0: i32, %arg1: i32, %arg2: memref<1x24x2xi32, #tpu.memory_space<vmem>>, %arg3: memref<1x1x24xi32, #tpu.memory_space<vmem>>, %arg4: memref<1x8x5xf32, #tpu.memory_space<vmem>>, %arg5: memref<1x24x3xf32, #tpu.memory_space<vmem>>, %arg6: memref<1x24x1xf32, #tpu.memory_space<vmem>>, %arg7: memref<1x8x1xf32, #tpu.memory_space<vmem>>, %arg8: memref<5x32xf32, #tpu.memory_space<vmem>>, %arg9: memref<1x32xf32, #tpu.memory_space<vmem>>, %arg10: memref<1x1x32x64xf32, #tpu.memory_space<vmem>>, %arg11: memref<1x1x152x32xf32, #tpu.memory_space<vmem>>, %arg12: memref<1x72x32xf32, #tpu.memory_space<vmem>>, %arg13: memref<1x2x32xf32, #tpu.memory_space<vmem>>, %arg14: memref<8x32xf32, #tpu.memory_space<vmem>>, %arg15: memref<24x20xf32, #tpu.memory_space<vmem>>, %arg16: memref<8x24xf32, #tpu.memory_space<vmem>>, %arg17: memref<20x32xf32, #tpu.memory_space<vmem>>, %arg18: memref<8x70xf32, #tpu.memory_space<vmem>>) attributes {dimension_semantics = [#tpu.dimension_semantics<parallel>, #tpu.dimension_semantics<arbitrary>], iteration_bounds = array<i64: 2, 3>, scalar_prefetch = 0 : i64, scratch_operands = 5 : i64, tpu.core_type = #tpu.core_type<tc>, window_params = [{transform_indices = @transform_0, window_bounds = array<i64: 1, 24, 2>}, {transform_indices = @transform_1, window_bounds = array<i64: 1, 1, 24>}, {transform_indices = @transform_2, window_bounds = array<i64: 1, 8, 5>}, {transform_indices = @transform_3, window_bounds = array<i64: 1, 24, 3>}, {transform_indices = @transform_4, window_bounds = array<i64: 1, 24, 1>}, {transform_indices = @transform_5, window_bounds = array<i64: 1, 8, 1>}, {pipeline_mode = #tpu.pipeline_mode<synchronous>, transform_indices = @transform_6, window_bounds = array<i64: 5, 32>}, {pipeline_mode = #tpu.pipeline_mode<synchronous>, transform_indices = @transform_7, window_bounds = array<i64: 1, 32>}, {transform_indices = @transform_8, window_bounds = array<i64: 1, 1, 32, 64>}, {transform_indices = @transform_9, window_bounds = array<i64: 1, 1, 152, 32>}, {transform_indices = @transform_10, window_bounds = array<i64: 1, 72, 32>}, {transform_indices = @transform_11, window_bounds = array<i64: 1, 2, 32>}]} {
    %c0_i32 = arith.constant 0 : i32
    %0 = arith.cmpi eq, %arg1, %c0_i32 : i32
    %1 = arith.extui %0 : i1 to i32
    %c0_i32_0 = arith.constant 0 : i32
    %2 = arith.cmpi ne, %1, %c0_i32_0 : i32
    scf.if %2 {
      %c0_71 = arith.constant 0 : index
      %c0_72 = arith.constant 0 : index
      %c0_73 = arith.constant 0 : index
      %91 = vector.load %arg4[%c0_71, %c0_72, %c0_73] : memref<1x8x5xf32, #tpu.memory_space<vmem>>, vector<1x8x5xf32>
      %92 = vector.shape_cast %91 : vector<1x8x5xf32> to vector<8x5xf32>
      %c0_74 = arith.constant 0 : index
      %c0_75 = arith.constant 0 : index
      %93 = vector.load %arg8[%c0_74, %c0_75] : memref<5x32xf32, #tpu.memory_space<vmem>>, vector<5x32xf32>
      %cst_76 = arith.constant dense<0.000000e+00> : vector<8x32xf32>
      %94 = tpu.matmul %92, %93, %cst_76 {dimension_numbers = #tpu.dot_dimension_numbers<[1], [0], [0], [1], [0, 0, 1, 1], [], []>} : vector<8x5xf32>, vector<5x32xf32>, vector<8x32xf32> -> vector<8x32xf32>
      %c0_77 = arith.constant 0 : index
      %c0_78 = arith.constant 0 : index
      %95 = vector.load %arg9[%c0_77, %c0_78] : memref<1x32xf32, #tpu.memory_space<vmem>>, vector<1x32xf32>
      %96 = vector.broadcast %95 : vector<1x32xf32> to vector<8x32xf32>
      %97 = arith.addf %94, %96 : vector<8x32xf32>
      %c0_79 = arith.constant 0 : index
      %c0_80 = arith.constant 0 : index
      %98 = vector.load %arg14[%c0_79, %c0_80] : memref<8x32xf32, #tpu.memory_space<vmem>>, vector<8x32xf32>
      tpu.vector_store %arg14[%c0_79, %c0_80], %97 {strides = array<i32>} : memref<8x32xf32, #tpu.memory_space<vmem>>, vector<8x32xf32>,
      %c0_81 = arith.constant 0 : index
      %c0_82 = arith.constant 0 : index
      %c0_83 = arith.constant 0 : index
      %99 = vector.load %arg2[%c0_81, %c0_82, %c0_83] : memref<1x24x2xi32, #tpu.memory_space<vmem>>, vector<1x24x1xi32>
      %100 = vector.shape_cast %99 : vector<1x24x1xi32> to vector<24x1xi32>
      %c0_84 = arith.constant 0 : index
      %c0_85 = arith.constant 0 : index
      %c1 = arith.constant 1 : index
      %101 = vector.load %arg2[%c0_84, %c0_85, %c1] : memref<1x24x2xi32, #tpu.memory_space<vmem>>, vector<1x24x1xi32>
      %102 = vector.shape_cast %101 : vector<1x24x1xi32> to vector<24x1xi32>
      %103 = tpu.iota {dimensions = array<i32: 1>} : vector<24x16xi32>
      %104 = vector.broadcast %100 : vector<24x1xi32> to vector<24x16xi32>
      %105 = arith.cmpi eq, %103, %104 : vector<24x16xi32>
      %c8_i32 = arith.constant 8 : i32
      %106 = vector.broadcast %c8_i32 : i32 to vector<24x1xi32>
      %107 = arith.addi %102, %106 : vector<24x1xi32>
      %108 = vector.broadcast %107 : vector<24x1xi32> to vector<24x16xi32>
      %109 = arith.cmpi eq, %103, %108 : vector<24x16xi32>
      %110 = arith.ori %105, %109 : vector<24x16xi1>
      %111 = arith.extui %110 : vector<24x16xi1> to vector<24x16xi32>
      %112 = arith.sitofp %111 : vector<24x16xi32> to vector<24x16xf32>
      %c0_86 = arith.constant 0 : index
      %c0_87 = arith.constant 0 : index
      %113 = vector.load %arg15[%c0_86, %c0_87] : memref<24x20xf32, #tpu.memory_space<vmem>>, vector<24x16xf32>
      tpu.vector_store %arg15[%c0_86, %c0_87], %112 {strides = array<i32>} : memref<24x20xf32, #tpu.memory_space<vmem>>, vector<24x16xf32>,
      %c0_88 = arith.constant 0 : index
      %c0_89 = arith.constant 0 : index
      %c0_90 = arith.constant 0 : index
      %114 = vector.load %arg5[%c0_88, %c0_89, %c0_90] : memref<1x24x3xf32, #tpu.memory_space<vmem>>, vector<1x24x3xf32>
      %115 = vector.shape_cast %114 : vector<1x24x3xf32> to vector<24x3xf32>
      %c0_91 = arith.constant 0 : index
      %c16_92 = arith.constant 16 : index
      %116 = vector.load %arg15[%c0_91, %c16_92] : memref<24x20xf32, #tpu.memory_space<vmem>>, vector<24x3xf32>
      tpu.vector_store %arg15[%c0_91, %c16_92], %115 {strides = array<i32>} : memref<24x20xf32, #tpu.memory_space<vmem>>, vector<24x3xf32>,
      %cst_93 = arith.constant 1.000000e+00 : f32
      %117 = vector.broadcast %cst_93 : f32 to vector<24x1xf32>
      %c0_94 = arith.constant 0 : index
      %c19 = arith.constant 19 : index
      %118 = vector.load %arg15[%c0_94, %c19] : memref<24x20xf32, #tpu.memory_space<vmem>>, vector<24x1xf32>
      tpu.vector_store %arg15[%c0_94, %c19], %117 {strides = array<i32>} : memref<24x20xf32, #tpu.memory_space<vmem>>, vector<24x1xf32>,
      %119 = tpu.iota {dimensions = array<i32: 0>} : vector<8x24xi32>
      %c0_95 = arith.constant 0 : index
      %c0_96 = arith.constant 0 : index
      %c0_97 = arith.constant 0 : index
      %120 = vector.load %arg3[%c0_95, %c0_96, %c0_97] : memref<1x1x24xi32, #tpu.memory_space<vmem>>, vector<1x1x24xi32>
      %121 = vector.shape_cast %120 : vector<1x1x24xi32> to vector<1x24xi32>
      %122 = vector.broadcast %121 : vector<1x24xi32> to vector<8x24xi32>
      %123 = arith.cmpi eq, %119, %122 : vector<8x24xi32>
      %124 = arith.extui %123 : vector<8x24xi1> to vector<8x24xi32>
      %125 = arith.sitofp %124 : vector<8x24xi32> to vector<8x24xf32>
      %c0_98 = arith.constant 0 : index
      %c0_99 = arith.constant 0 : index
      %126 = vector.load %arg16[%c0_98, %c0_99] : memref<8x24xf32, #tpu.memory_space<vmem>>, vector<8x24xf32>
      tpu.vector_store %arg16[%c0_98, %c0_99], %125 {strides = array<i32>} : memref<8x24xf32, #tpu.memory_space<vmem>>, vector<8x24xf32>,
      %c0_100 = arith.constant 0 : index
      %c0_101 = arith.constant 0 : index
      %c0_102 = arith.constant 0 : index
      %127 = vector.load %arg4[%c0_100, %c0_101, %c0_102] : memref<1x8x5xf32, #tpu.memory_space<vmem>>, vector<1x8x5xf32>
      %128 = vector.shape_cast %127 : vector<1x8x5xf32> to vector<8x5xf32>
      %c0_103 = arith.constant 0 : index
      %c64 = arith.constant 64 : index
      %129 = vector.load %arg18[%c0_103, %c64] : memref<8x70xf32, #tpu.memory_space<vmem>>, vector<8x5xf32>
      tpu.vector_store %arg18[%c0_103, %c64], %128 {strides = array<i32>} : memref<8x70xf32, #tpu.memory_space<vmem>>, vector<8x5xf32>,
      %cst_104 = arith.constant 1.000000e+00 : f32
      %130 = vector.broadcast %cst_104 : f32 to vector<8x1xf32>
      %c0_105 = arith.constant 0 : index
      %c69 = arith.constant 69 : index
      %131 = vector.load %arg18[%c0_105, %c69] : memref<8x70xf32, #tpu.memory_space<vmem>>, vector<8x1xf32>
      tpu.vector_store %arg18[%c0_105, %c69], %130 {strides = array<i32>} : memref<8x70xf32, #tpu.memory_space<vmem>>, vector<8x1xf32>,
    } else {
    }
    %c0 = arith.constant 0 : index
    %c0_1 = arith.constant 0 : index
    %3 = vector.load %arg14[%c0, %c0_1] : memref<8x32xf32, #tpu.memory_space<vmem>>, vector<8x32xf32>
    %c0_2 = arith.constant 0 : index
    %c0_3 = arith.constant 0 : index
    %c0_4 = arith.constant 0 : index
    %c0_5 = arith.constant 0 : index
    %4 = vector.load %arg10[%c0_2, %c0_3, %c0_4, %c0_5] : memref<1x1x32x64xf32, #tpu.memory_space<vmem>>, vector<1x1x32x64xf32>
    %5 = vector.shape_cast %4 : vector<1x1x32x64xf32> to vector<32x64xf32>
    %cst = arith.constant dense<0.000000e+00> : vector<8x64xf32>
    %6 = tpu.matmul %3, %5, %cst {dimension_numbers = #tpu.dot_dimension_numbers<[1], [0], [0], [1], [0, 0, 1, 1], [], []>} : vector<8x32xf32>, vector<32x64xf32>, vector<8x64xf32> -> vector<8x64xf32>
    %7 = vector.extract_strided_slice %6 {offsets = [0, 0], sizes = [8, 32], strides = [1, 1]} : vector<8x64xf32> to vector<8x32xf32>
    %c0_6 = arith.constant 0 : index
    %c0_7 = arith.constant 0 : index
    %8 = vector.load %arg17[%c0_6, %c0_7] : memref<20x32xf32, #tpu.memory_space<vmem>>, vector<8x32xf32>
    tpu.vector_store %arg17[%c0_6, %c0_7], %7 {strides = array<i32>} : memref<20x32xf32, #tpu.memory_space<vmem>>, vector<8x32xf32>,
    %9 = vector.extract_strided_slice %6 {offsets = [0, 32], sizes = [8, 32], strides = [1, 1]} : vector<8x64xf32> to vector<8x32xf32>
    %c8 = arith.constant 8 : index
    %c0_8 = arith.constant 0 : index
    %10 = vector.load %arg17[%c8, %c0_8] : memref<20x32xf32, #tpu.memory_space<vmem>>, vector<8x32xf32>
    tpu.vector_store %arg17[%c8, %c0_8], %9 {strides = array<i32>} : memref<20x32xf32, #tpu.memory_space<vmem>>, vector<8x32xf32>,
    %c0_9 = arith.constant 0 : index
    %c0_10 = arith.constant 0 : index
    %c0_11 = arith.constant 0 : index
    %c0_12 = arith.constant 0 : index
    %11 = vector.load %arg11[%c0_9, %c0_10, %c0_11, %c0_12] : memref<1x1x152x32xf32, #tpu.memory_space<vmem>>, vector<1x1x4x32xf32>
    %12 = vector.shape_cast %11 : vector<1x1x4x32xf32> to vector<4x32xf32>
    %c16 = arith.constant 16 : index
    %c0_13 = arith.constant 0 : index
    %13 = vector.load %arg17[%c16, %c0_13] : memref<20x32xf32, #tpu.memory_space<vmem>>, vector<4x32xf32>
    tpu.vector_store %arg17[%c16, %c0_13], %12 {strides = array<i32>} : memref<20x32xf32, #tpu.memory_space<vmem>>, vector<4x32xf32>,
    %c0_14 = arith.constant 0 : index
    %c0_15 = arith.constant 0 : index
    %14 = vector.load %arg15[%c0_14, %c0_15] : memref<24x20xf32, #tpu.memory_space<vmem>>, vector<24x20xf32>
    %c0_16 = arith.constant 0 : index
    %c0_17 = arith.constant 0 : index
    %15 = vector.load %arg17[%c0_16, %c0_17] : memref<20x32xf32, #tpu.memory_space<vmem>>, vector<20x32xf32>
    %cst_18 = arith.constant dense<0.000000e+00> : vector<24x32xf32>
    %16 = tpu.matmul %14, %15, %cst_18 {dimension_numbers = #tpu.dot_dimension_numbers<[1], [0], [0], [1], [0, 0, 1, 1], [], []>} : vector<24x20xf32>, vector<20x32xf32>, vector<24x32xf32> -> vector<24x32xf32>
    %cst_19 = arith.constant 0.000000e+00 : f32
    %17 = vector.broadcast %cst_19 : f32 to vector<24x32xf32>
    %18 = arith.subf %17, %16 : vector<24x32xf32>
    %19 = math.exp %18 : vector<24x32xf32>
    %cst_20 = arith.constant 1.000000e+00 : f32
    %20 = vector.broadcast %cst_20 : f32 to vector<24x32xf32>
    %21 = arith.addf %20, %19 : vector<24x32xf32>
    %cst_21 = arith.constant 1.000000e+00 : f32
    %22 = vector.broadcast %cst_21 : f32 to vector<24x32xf32>
    %23 = arith.divf %22, %21 : vector<24x32xf32>
    %24 = arith.mulf %16, %23 : vector<24x32xf32>
    %c0_22 = arith.constant 0 : index
    %c0_23 = arith.constant 0 : index
    %c8_24 = arith.constant 8 : index
    %c0_25 = arith.constant 0 : index
    %25 = vector.load %arg11[%c0_22, %c0_23, %c8_24, %c0_25] : memref<1x1x152x32xf32, #tpu.memory_space<vmem>>, vector<1x1x32x32xf32>
    %26 = vector.shape_cast %25 : vector<1x1x32x32xf32> to vector<32x32xf32>
    %c0_26 = arith.constant 0 : index
    %c0_27 = arith.constant 0 : index
    %c40 = arith.constant 40 : index
    %c0_28 = arith.constant 0 : index
    %27 = vector.load %arg11[%c0_26, %c0_27, %c40, %c0_28] : memref<1x1x152x32xf32, #tpu.memory_space<vmem>>, vector<1x1x1x32xf32>
    %28 = vector.shape_cast %27 : vector<1x1x1x32xf32> to vector<1x32xf32>
    %c0_29 = arith.constant 0 : index
    %c0_30 = arith.constant 0 : index
    %c41 = arith.constant 41 : index
    %c0_31 = arith.constant 0 : index
    %29 = vector.load %arg11[%c0_29, %c0_30, %c41, %c0_31] : memref<1x1x152x32xf32, #tpu.memory_space<vmem>>, vector<1x1x1x32xf32>
    %30 = vector.shape_cast %29 : vector<1x1x1x32xf32> to vector<1x32xf32>
    %c0_32 = arith.constant 0 : index
    %c0_33 = arith.constant 0 : index
    %c42 = arith.constant 42 : index
    %c0_34 = arith.constant 0 : index
    %31 = vector.load %arg11[%c0_32, %c0_33, %c42, %c0_34] : memref<1x1x152x32xf32, #tpu.memory_space<vmem>>, vector<1x1x1x1xf32>
    %32 = vector.shape_cast %31 : vector<1x1x1x1xf32> to vector<1x1xf32>
    %c0_35 = arith.constant 0 : index
    %c0_36 = arith.constant 0 : index
    %c43 = arith.constant 43 : index
    %c0_37 = arith.constant 0 : index
    %33 = vector.load %arg11[%c0_35, %c0_36, %c43, %c0_37] : memref<1x1x152x32xf32, #tpu.memory_space<vmem>>, vector<1x1x1x32xf32>
    %34 = vector.shape_cast %33 : vector<1x1x1x32xf32> to vector<1x32xf32>
    %cst_38 = arith.constant dense<0.000000e+00> : vector<24x32xf32>
    %35 = tpu.matmul %24, %26, %cst_38 {dimension_numbers = #tpu.dot_dimension_numbers<[1], [0], [0], [1], [0, 0, 1, 1], [], []>} : vector<24x32xf32>, vector<32x32xf32>, vector<24x32xf32> -> vector<24x32xf32>
    %36 = vector.broadcast %28 : vector<1x32xf32> to vector<24x32xf32>
    %37 = arith.addf %35, %36 : vector<24x32xf32>
    %cst_39 = arith.constant 0.000000e+00 : f32
    %38 = vector.broadcast %cst_39 : f32 to vector<24x32xf32>
    %39 = arith.subf %38, %37 : vector<24x32xf32>
    %40 = math.exp %39 : vector<24x32xf32>
    %cst_40 = arith.constant 1.000000e+00 : f32
    %41 = vector.broadcast %cst_40 : f32 to vector<24x32xf32>
    %42 = arith.addf %41, %40 : vector<24x32xf32>
    %cst_41 = arith.constant 1.000000e+00 : f32
    %43 = vector.broadcast %cst_41 : f32 to vector<24x32xf32>
    %44 = arith.divf %43, %42 : vector<24x32xf32>
    %45 = arith.mulf %37, %44 : vector<24x32xf32>
    %46 = vector.broadcast %30 : vector<1x32xf32> to vector<24x32xf32>
    %47 = arith.mulf %45, %46 : vector<24x32xf32>
    %cst_42 = arith.constant dense<0.000000e+00> : vector<24xf32>
    %48 = vector.multi_reduction <add>, %47, %cst_42 [1] : vector<24x32xf32> to vector<24xf32>
    %49 = vector.shape_cast %48 : vector<24xf32> to vector<24x1xf32>
    %50 = vector.broadcast %32 : vector<1x1xf32> to vector<24x1xf32>
    %51 = arith.addf %49, %50 : vector<24x1xf32>
    %cst_43 = arith.constant 0.000000e+00 : f32
    %52 = vector.broadcast %cst_43 : f32 to vector<24x1xf32>
    %53 = arith.subf %52, %51 : vector<24x1xf32>
    %54 = math.exp %53 : vector<24x1xf32>
    %cst_44 = arith.constant 1.000000e+00 : f32
    %55 = vector.broadcast %cst_44 : f32 to vector<24x1xf32>
    %56 = arith.addf %55, %54 : vector<24x1xf32>
    %cst_45 = arith.constant 1.000000e+00 : f32
    %57 = vector.broadcast %cst_45 : f32 to vector<24x1xf32>
    %58 = arith.divf %57, %56 : vector<24x1xf32>
    %59 = vector.broadcast %58 : vector<24x1xf32> to vector<24x32xf32>
    %60 = arith.mulf %45, %59 : vector<24x32xf32>
    %c0_46 = arith.constant 0 : index
    %c0_47 = arith.constant 0 : index
    %c0_48 = arith.constant 0 : index
    %61 = vector.load %arg6[%c0_46, %c0_47, %c0_48] : memref<1x24x1xf32, #tpu.memory_space<vmem>>, vector<1x24x1xf32>
    %62 = vector.shape_cast %61 : vector<1x24x1xf32> to vector<24x1xf32>
    %63 = vector.broadcast %62 : vector<24x1xf32> to vector<24x32xf32>
    %64 = arith.mulf %60, %63 : vector<24x32xf32>
    %c0_49 = arith.constant 0 : index
    %c0_50 = arith.constant 0 : index
    %65 = vector.load %arg16[%c0_49, %c0_50] : memref<8x24xf32, #tpu.memory_space<vmem>>, vector<8x24xf32>
    %cst_51 = arith.constant dense<0.000000e+00> : vector<8x32xf32>
    %66 = tpu.matmul %65, %64, %cst_51 {dimension_numbers = #tpu.dot_dimension_numbers<[1], [0], [0], [1], [0, 0, 1, 1], [], []>} : vector<8x24xf32>, vector<24x32xf32>, vector<8x32xf32> -> vector<8x32xf32>
    %c0_52 = arith.constant 0 : index
    %c0_53 = arith.constant 0 : index
    %67 = vector.load %arg18[%c0_52, %c0_53] : memref<8x70xf32, #tpu.memory_space<vmem>>, vector<8x32xf32>
    tpu.vector_store %arg18[%c0_52, %c0_53], %3 {strides = array<i32>} : memref<8x70xf32, #tpu.memory_space<vmem>>, vector<8x32xf32>,
    %c0_54 = arith.constant 0 : index
    %c32 = arith.constant 32 : index
    %68 = vector.load %arg18[%c0_54, %c32] : memref<8x70xf32, #tpu.memory_space<vmem>>, vector<8x32xf32>
    tpu.vector_store %arg18[%c0_54, %c32], %66 {strides = array<i32>} : memref<8x70xf32, #tpu.memory_space<vmem>>, vector<8x32xf32>,
    %c0_55 = arith.constant 0 : index
    %c0_56 = arith.constant 0 : index
    %c48 = arith.constant 48 : index
    %c0_57 = arith.constant 0 : index
    %69 = vector.load %arg11[%c0_55, %c0_56, %c48, %c0_57] : memref<1x1x152x32xf32, #tpu.memory_space<vmem>>, vector<1x1x70x32xf32>
    %70 = vector.shape_cast %69 : vector<1x1x70x32xf32> to vector<70x32xf32>
    %c0_58 = arith.constant 0 : index
    %c0_59 = arith.constant 0 : index
    %71 = vector.load %arg18[%c0_58, %c0_59] : memref<8x70xf32, #tpu.memory_space<vmem>>, vector<8x70xf32>
    %cst_60 = arith.constant dense<0.000000e+00> : vector<8x32xf32>
    %72 = tpu.matmul %71, %70, %cst_60 {dimension_numbers = #tpu.dot_dimension_numbers<[1], [0], [0], [1], [0, 0, 1, 1], [], []>} : vector<8x70xf32>, vector<70x32xf32>, vector<8x32xf32> -> vector<8x32xf32>
    %cst_61 = arith.constant 0.000000e+00 : f32
    %73 = vector.broadcast %cst_61 : f32 to vector<8x32xf32>
    %74 = arith.subf %73, %72 : vector<8x32xf32>
    %75 = math.exp %74 : vector<8x32xf32>
    %cst_62 = arith.constant 1.000000e+00 : f32
    %76 = vector.broadcast %cst_62 : f32 to vector<8x32xf32>
    %77 = arith.addf %76, %75 : vector<8x32xf32>
    %cst_63 = arith.constant 1.000000e+00 : f32
    %78 = vector.broadcast %cst_63 : f32 to vector<8x32xf32>
    %79 = arith.divf %78, %77 : vector<8x32xf32>
    %80 = arith.mulf %72, %79 : vector<8x32xf32>
    %c0_64 = arith.constant 0 : index
    %c0_65 = arith.constant 0 : index
    %c120 = arith.constant 120 : index
    %c0_66 = arith.constant 0 : index
    %81 = vector.load %arg11[%c0_64, %c0_65, %c120, %c0_66] : memref<1x1x152x32xf32, #tpu.memory_space<vmem>>, vector<1x1x32x32xf32>
    %82 = vector.shape_cast %81 : vector<1x1x32x32xf32> to vector<32x32xf32>
    %cst_67 = arith.constant dense<0.000000e+00> : vector<8x32xf32>
    %83 = tpu.matmul %80, %82, %cst_67 {dimension_numbers = #tpu.dot_dimension_numbers<[1], [0], [0], [1], [0, 0, 1, 1], [], []>} : vector<8x32xf32>, vector<32x32xf32>, vector<8x32xf32> -> vector<8x32xf32>
    %84 = arith.addf %3, %83 : vector<8x32xf32>
    %85 = vector.broadcast %34 : vector<1x32xf32> to vector<8x32xf32>
    %86 = arith.addf %84, %85 : vector<8x32xf32>
    %c0_68 = arith.constant 0 : index
    %c0_69 = arith.constant 0 : index
    %87 = vector.load %arg14[%c0_68, %c0_69] : memref<8x32xf32, #tpu.memory_space<vmem>>, vector<8x32xf32>
    tpu.vector_store %arg14[%c0_68, %c0_69], %86 {strides = array<i32>} : memref<8x32xf32, #tpu.memory_space<vmem>>, vector<8x32xf32>,
    %c2_i32 = arith.constant 2 : i32
    %88 = arith.cmpi eq, %arg1, %c2_i32 : i32
    %89 = arith.extui %88 : i1 to i32
    %c0_i32_70 = arith.constant 0 : i32
    %90 = arith.cmpi ne, %89, %c0_i32_70 : i32
    scf.if %90 {
      %c0_71 = arith.constant 0 : index
      %c0_72 = arith.constant 0 : index
      %c0_73 = arith.constant 0 : index
      %91 = vector.load %arg12[%c0_71, %c0_72, %c0_73] : memref<1x72x32xf32, #tpu.memory_space<vmem>>, vector<1x32x32xf32>
      %92 = vector.shape_cast %91 : vector<1x32x32xf32> to vector<32x32xf32>
      %cst_74 = arith.constant dense<0.000000e+00> : vector<8x32xf32>
      %93 = tpu.matmul %86, %92, %cst_74 {dimension_numbers = #tpu.dot_dimension_numbers<[1], [0], [0], [1], [0, 0, 1, 1], [], []>} : vector<8x32xf32>, vector<32x32xf32>, vector<8x32xf32> -> vector<8x32xf32>
      %c0_75 = arith.constant 0 : index
      %c64 = arith.constant 64 : index
      %c0_76 = arith.constant 0 : index
      %94 = vector.load %arg12[%c0_75, %c64, %c0_76] : memref<1x72x32xf32, #tpu.memory_space<vmem>>, vector<1x1x32xf32>
      %95 = vector.shape_cast %94 : vector<1x1x32xf32> to vector<1x32xf32>
      %96 = vector.broadcast %95 : vector<1x32xf32> to vector<8x32xf32>
      %97 = arith.addf %93, %96 : vector<8x32xf32>
      %cst_77 = arith.constant 0.000000e+00 : f32
      %98 = vector.broadcast %cst_77 : f32 to vector<8x32xf32>
      %99 = arith.subf %98, %97 : vector<8x32xf32>
      %100 = math.exp %99 : vector<8x32xf32>
      %cst_78 = arith.constant 1.000000e+00 : f32
      %101 = vector.broadcast %cst_78 : f32 to vector<8x32xf32>
      %102 = arith.addf %101, %100 : vector<8x32xf32>
      %cst_79 = arith.constant 1.000000e+00 : f32
      %103 = vector.broadcast %cst_79 : f32 to vector<8x32xf32>
      %104 = arith.divf %103, %102 : vector<8x32xf32>
      %105 = arith.mulf %97, %104 : vector<8x32xf32>
      %c0_80 = arith.constant 0 : index
      %c32_81 = arith.constant 32 : index
      %c0_82 = arith.constant 0 : index
      %106 = vector.load %arg12[%c0_80, %c32_81, %c0_82] : memref<1x72x32xf32, #tpu.memory_space<vmem>>, vector<1x32x32xf32>
      %107 = vector.shape_cast %106 : vector<1x32x32xf32> to vector<32x32xf32>
      %cst_83 = arith.constant dense<0.000000e+00> : vector<8x32xf32>
      %108 = tpu.matmul %105, %107, %cst_83 {dimension_numbers = #tpu.dot_dimension_numbers<[1], [0], [0], [1], [0, 0, 1, 1], [], []>} : vector<8x32xf32>, vector<32x32xf32>, vector<8x32xf32> -> vector<8x32xf32>
      %c0_84 = arith.constant 0 : index
      %c65 = arith.constant 65 : index
      %c0_85 = arith.constant 0 : index
      %109 = vector.load %arg12[%c0_84, %c65, %c0_85] : memref<1x72x32xf32, #tpu.memory_space<vmem>>, vector<1x1x32xf32>
      %110 = vector.shape_cast %109 : vector<1x1x32xf32> to vector<1x32xf32>
      %111 = vector.broadcast %110 : vector<1x32xf32> to vector<8x32xf32>
      %112 = arith.addf %108, %111 : vector<8x32xf32>
      %c0_86 = arith.constant 0 : index
      %c0_87 = arith.constant 0 : index
      %c0_88 = arith.constant 0 : index
      %113 = vector.load %arg7[%c0_86, %c0_87, %c0_88] : memref<1x8x1xf32, #tpu.memory_space<vmem>>, vector<1x8x1xf32>
      %114 = vector.shape_cast %113 : vector<1x8x1xf32> to vector<8x1xf32>
      %115 = vector.broadcast %114 : vector<8x1xf32> to vector<8x32xf32>
      %116 = arith.mulf %112, %115 : vector<8x32xf32>
      %117 = tpu.iota {dimensions = array<i32: 1>} : vector<2x8xi32>
      %118 = tpu.iota {dimensions = array<i32: 0>} : vector<2x8xi32>
      %c4_i32 = arith.constant 4 : i32
      %119 = vector.broadcast %c4_i32 : i32 to vector<2x8xi32>
      %120 = arith.muli %118, %119 : vector<2x8xi32>
      %121 = arith.cmpi sge, %117, %120 : vector<2x8xi32>
      %c4_i32_89 = arith.constant 4 : i32
      %122 = vector.broadcast %c4_i32_89 : i32 to vector<2x8xi32>
      %123 = arith.addi %120, %122 : vector<2x8xi32>
      %124 = arith.cmpi slt, %117, %123 : vector<2x8xi32>
      %125 = arith.andi %121, %124 : vector<2x8xi1>
      %126 = arith.extui %125 : vector<2x8xi1> to vector<2x8xi32>
      %127 = arith.sitofp %126 : vector<2x8xi32> to vector<2x8xf32>
      %cst_90 = arith.constant dense<0.000000e+00> : vector<2x32xf32>
      %128 = tpu.matmul %127, %116, %cst_90 {dimension_numbers = #tpu.dot_dimension_numbers<[1], [0], [0], [1], [0, 0, 1, 1], [], []>} : vector<2x8xf32>, vector<8x32xf32>, vector<2x32xf32> -> vector<2x32xf32>
      %c0_91 = arith.constant 0 : index
      %c0_92 = arith.constant 0 : index
      %c0_93 = arith.constant 0 : index
      %129 = vector.load %arg13[%c0_91, %c0_92, %c0_93] : memref<1x2x32xf32, #tpu.memory_space<vmem>>, vector<1x2x32xf32>
      %130 = vector.shape_cast %129 : vector<1x2x32xf32> to vector<2x32xf32>
      %131 = vector.shape_cast %128 : vector<2x32xf32> to vector<1x2x32xf32>
      tpu.vector_store %arg13[%c0_91, %c0_92, %c0_93], %131 {strides = array<i32>} : memref<1x2x32xf32, #tpu.memory_space<vmem>>, vector<1x2x32xf32>,
    } else {
    }
    return
  }
  func.func @transform_0(%arg0: i32, %arg1: i32) -> (i32, i32, i32) {
    %c0_i32 = arith.constant 0 : i32
    %c0_i32_0 = arith.constant 0 : i32
    %c0_i32_1 = arith.constant 0 : i32
    return %arg0, %c0_i32, %c0_i32_0 : i32, i32, i32
  }
  func.func @transform_1(%arg0: i32, %arg1: i32) -> (i32, i32, i32) {
    %c0_i32 = arith.constant 0 : i32
    %c0_i32_0 = arith.constant 0 : i32
    %c0_i32_1 = arith.constant 0 : i32
    return %arg0, %c0_i32, %c0_i32_0 : i32, i32, i32
  }
  func.func @transform_2(%arg0: i32, %arg1: i32) -> (i32, i32, i32) {
    %c0_i32 = arith.constant 0 : i32
    %c0_i32_0 = arith.constant 0 : i32
    %c0_i32_1 = arith.constant 0 : i32
    return %arg0, %c0_i32, %c0_i32_0 : i32, i32, i32
  }
  func.func @transform_3(%arg0: i32, %arg1: i32) -> (i32, i32, i32) {
    %c0_i32 = arith.constant 0 : i32
    %c0_i32_0 = arith.constant 0 : i32
    %c0_i32_1 = arith.constant 0 : i32
    return %arg0, %c0_i32, %c0_i32_0 : i32, i32, i32
  }
  func.func @transform_4(%arg0: i32, %arg1: i32) -> (i32, i32, i32) {
    %c0_i32 = arith.constant 0 : i32
    %c0_i32_0 = arith.constant 0 : i32
    %c0_i32_1 = arith.constant 0 : i32
    return %arg0, %c0_i32, %c0_i32_0 : i32, i32, i32
  }
  func.func @transform_5(%arg0: i32, %arg1: i32) -> (i32, i32, i32) {
    %c0_i32 = arith.constant 0 : i32
    %c0_i32_0 = arith.constant 0 : i32
    %c0_i32_1 = arith.constant 0 : i32
    return %arg0, %c0_i32, %c0_i32_0 : i32, i32, i32
  }
  func.func @transform_6(%arg0: i32, %arg1: i32) -> (i32, i32) {
    %c0_i32 = arith.constant 0 : i32
    %c0_i32_0 = arith.constant 0 : i32
    %c0_i32_1 = arith.constant 0 : i32
    return %c0_i32, %c0_i32_0 : i32, i32
  }
  func.func @transform_7(%arg0: i32, %arg1: i32) -> (i32, i32) {
    %c0_i32 = arith.constant 0 : i32
    %c0_i32_0 = arith.constant 0 : i32
    %c0_i32_1 = arith.constant 0 : i32
    return %c0_i32, %c0_i32_0 : i32, i32
  }
  func.func @transform_8(%arg0: i32, %arg1: i32) -> (i32, i32, i32, i32) {
    %c0_i32 = arith.constant 0 : i32
    %c0_i32_0 = arith.constant 0 : i32
    %c0_i32_1 = arith.constant 0 : i32
    return %arg0, %arg1, %c0_i32, %c0_i32_0 : i32, i32, i32, i32
  }
  func.func @transform_9(%arg0: i32, %arg1: i32) -> (i32, i32, i32, i32) {
    %c0_i32 = arith.constant 0 : i32
    %c0_i32_0 = arith.constant 0 : i32
    %c0_i32_1 = arith.constant 0 : i32
    return %arg0, %arg1, %c0_i32, %c0_i32_0 : i32, i32, i32, i32
  }
  func.func @transform_10(%arg0: i32, %arg1: i32) -> (i32, i32, i32) {
    %c0_i32 = arith.constant 0 : i32
    %c0_i32_0 = arith.constant 0 : i32
    %c0_i32_1 = arith.constant 0 : i32
    return %arg0, %c0_i32, %c0_i32_0 : i32, i32, i32
  }
  func.func @transform_11(%arg0: i32, %arg1: i32) -> (i32, i32, i32) {
    %c0_i32 = arith.constant 0 : i32
    %c0_i32_0 = arith.constant 0 : i32
    %c0_i32_1 = arith.constant 0 : i32
    return %arg0, %c0_i32, %c0_i32_0 : i32, i32, i32
  }
}

</mosaic_0001>

<llo_original>
// kernel: tpu_custom_call.1
$region0: #{tpu_custom_call.1}
  #allocation0 [shape = 'u32[]', space=smem, size = 0x4, offset = 0x4, fixed_abs, tag = 'smem constant byte address 0x4 - core index']
  #allocation1 [shape = 'u32[144,128]{1,0:T(1,128)}', space=vmem, size = 0x12000, scoped, tag = 'internal scratch']
  #allocation2 [shape = 'f32[8,32]{1,0:T(8,128)}', space=vmem, size = 0x1000, scoped, tag = 'scratch operand']
  #allocation3 [shape = 'f32[24,20]{1,0:T(8,128)}', space=vmem, size = 0x3000, scoped, tag = 'scratch operand']
  #allocation4 [shape = 'f32[8,24]{1,0:T(8,128)}', space=vmem, size = 0x1000, scoped, tag = 'scratch operand']
  #allocation5 [shape = 'f32[20,32]{1,0:T(8,128)}', space=vmem, size = 0x3000, scoped, tag = 'scratch operand']
  #allocation6 [shape = 'f32[8,70]{1,0:T(8,128)}', space=vmem, size = 0x1000, scoped, tag = 'scratch operand']
  %s0 = inlined_call_operand.vmem [shape: s32[2,24,2], index: 0, kind: input, shape index: {}]
  %s1 = inlined_call_operand.vmem [shape: s32[2,1,24], index: 1, kind: input, shape index: {}]
  %s2 = inlined_call_operand.vmem [shape: f32[2,8,5], index: 2, kind: input, shape index: {}]
  %s3 = inlined_call_operand.vmem [shape: f32[2,24,3], index: 3, kind: input, shape index: {}]
  %s4 = inlined_call_operand.vmem [shape: f32[2,24,1], index: 4, kind: input, shape index: {}]
  %s5 = inlined_call_operand.vmem [shape: f32[2,8,1], index: 5, kind: input, shape index: {}]
  %s6 = inlined_call_operand.vmem [shape: f32[5,32], index: 6, kind: input, shape index: {}]
  %s7 = inlined_call_operand.vmem [shape: f32[1,32], index: 7, kind: input, shape index: {}]
  %s8 = inlined_call_operand.vmem [shape: f32[2,3,32,64], index: 8, kind: input, shape index: {}]
  %s9 = inlined_call_operand.vmem [shape: f32[2,3,152,32], index: 9, kind: input, shape index: {}]
  %s10 = inlined_call_operand.vmem [shape: f32[2,72,32], index: 10, kind: input, shape index: {}]
  %s11 = inlined_call_operand.hbm [shape: f32[2,2,32], index: 11, kind: output, shape index: {}]
  %s12 = sld [smem:[#allocation0]]
  $region85: #{tpu_custom_call.1} parent=0
    _
  %s14 = ssub.s32 1, %s12
  %s15 = scalar_select 0, %s14, %s12
  $region1: #{tpu_custom_call.1} parent=0
    #allocation7 [shape = 'u8[2048]{0}', space=vmem, size = 0x800, scoped, tag = 'output window, operand 0']
    #allocation8 [shape = 's32[2]{0}', space=sflag, size = 0x8, scoped, tag = 'scoped memory for tpu_custom_call.1']
    %16 = vsyncpa [#allocation8], 0
    %s17 = scalar_lea.sflag [#allocation8], 1
    %18 = vsyncpa %s17, 0
    loop: start=0, step=1, limit=8
    $region2: #{tpu_custom_call.1} parent=1 // loop_pre_header
      _
    $region3: #{tpu_custom_call.1} parent=1 // loop_header
      %s20 = sphi 0, %s24
      %p21 = scmp.ge.s32.totalorder %s20, 8
      %s27 = sphi 0, %s39
      %s28 = sphi 0, %s35
      %s29 = sphi 0, %s27
      %s30 = sphi 0, %s28
      %s31 = sphi 0, %s29
      %s32 = sphi 0, %s30
      %s42 = sphi 0, %s44
      %s45 = sphi 0, %s42
      %s46 = sphi 0, %s45
      %s62 = sphi 0, %s46
      %s68 = sphi 0, %s70
      %s71 = sphi 0, %s68
      %s72 = sphi 0, %s71
      %s88 = sphi 0, %s72
      %s94 = sphi 0, %s96
      %s97 = sphi 0, %s94
      %s98 = sphi 0, %s97
      %s114 = sphi 0, %s98
      %s120 = sphi 0, %s122
      %s123 = sphi 0, %s120
      %s124 = sphi 0, %s123
      %s140 = sphi 0, %s124
      %s146 = sphi 0, %s148
      %s149 = sphi 0, %s146
      %s150 = sphi 0, %s149
      %s166 = sphi 0, %s150
      %s172 = sphi 0, %s174
      %s175 = sphi 0, %s172
      %s176 = sphi 0, %s175
      %s192 = sphi 0, %s176
      %s196 = sphi 0, %s196
      %s198 = sphi 0, %s196
      %s199 = sphi 0, %s198
      %s213 = sphi 0, %s199
      %s217 = sphi 0, %s217
      %s219 = sphi 0, %s217
      %s220 = sphi 0, %s219
      %s234 = sphi 0, %s220
      %s242 = sphi 0, %s244
      %s245 = sphi 0, %s242
      %s246 = sphi 0, %s245
      %s262 = sphi 0, %s246
      %s270 = sphi 0, %s272
      %s273 = sphi 0, %s270
      %s274 = sphi 0, %s273
      %s290 = sphi 0, %s274
      %s296 = sphi 0, %s298
      %s299 = sphi 0, %s296
      %s300 = sphi 0, %s299
      %s316 = sphi 0, %s300
      %s322 = sphi 0, %s324
      %s325 = sphi 0, %s322
      %s326 = sphi 0, %s325
      %s342 = sphi 0, %s326
    $region4: #{tpu_custom_call.1} parent=1 // loop_header_branch
      %23 = sbr.rel (%p21) target = $region8
    $region5: #{tpu_custom_call.1} parent=1 // loop_body
      %s25 = ssub.s32 %s20, 1
      %s26 = ssub.s32 %s20, 2
      %s33 = sadd.s32 1, %s28
      %p34 = scmp.ge.s32.totalorder %s33, 3
      %s35 = scalar_select %p34, 0, %s33
      %s36 = sadd.s32 1, %s27
      %s37 = scalar_select %p34, %s36, %s27
      %p38 = scmp.ge.s32.totalorder %s37, 2
      %s39 = scalar_select %p38, 0, %s37
      %s40 = ssub.s32 %s27, %s39
      %p41 = scmp.eq.s32.totalorder %s40, 0
      %s43 = sadd.s32 %s42, 1
      %s44 = scalar_select %p41, %s42, %s43
      %p47 = pneg %p41
      %p48 = scmp.eq.s32.totalorder %s20, 5
      %p49 = por %p47, %p48
      %p50 = scmp.ne.s32.totalorder %s42, %s45
      %p51 = scmp.eq.s32.totalorder %s20, 0
      %p52 = por %p50, %p51
      %p53 = scmp.ne.s32.totalorder %s42, %s45
      %p54 = scmp.eq.s32.totalorder %s25, 5
      %p55 = por %p53, %p54
      %p56 = scmp.ne.s32.totalorder %s45, %s46
      %p57 = scmp.eq.s32.totalorder %s25, 0
      %p58 = por %p56, %p57
      %p59 = scmp.ne.s32.totalorder %s45, %s46
      %p60 = scmp.eq.s32.totalorder %s26, 5
      %p61 = por %p59, %p60
      %p63 = scmp.ne.s32.totalorder %s46, %s62
      %p64 = scmp.eq.s32.totalorder %s26, 0
      %p65 = por %p63, %p64
      %s66 = ssub.s32 %s27, %s39
      %p67 = scmp.eq.s32.totalorder %s66, 0
      %s69 = sadd.s32 %s68, 1
      %s70 = scalar_select %p67, %s68, %s69
      %p73 = pneg %p67
      %p74 = scmp.eq.s32.totalorder %s20, 5
      %p75 = por %p73, %p74
      %p76 = scmp.ne.s32.totalorder %s68, %s71
      %p77 = scmp.eq.s32.totalorder %s20, 0
      %p78 = por %p76, %p77
      %p79 = scmp.ne.s32.totalorder %s68, %s71
      %p80 = scmp.eq.s32.totalorder %s25, 5
      %p81 = por %p79, %p80
      %p82 = scmp.ne.s32.totalorder %s71, %s72
      %p83 = scmp.eq.s32.totalorder %s25, 0
      %p84 = por %p82, %p83
      %p85 = scmp.ne.s32.totalorder %s71, %s72
      %p86 = scmp.eq.s32.totalorder %s26, 5
      %p87 = por %p85, %p86
      %p89 = scmp.ne.s32.totalorder %s72, %s88
      %p90 = scmp.eq.s32.totalorder %s26, 0
      %p91 = por %p89, %p90
      %s92 = ssub.s32 %s27, %s39
      %p93 = scmp.eq.s32.totalorder %s92, 0
      %s95 = sadd.s32 %s94, 1
      %s96 = scalar_select %p93, %s94, %s95
      %p99 = pneg %p93
      %p100 = scmp.eq.s32.totalorder %s20, 5
      %p101 = por %p99, %p100
      %p102 = scmp.ne.s32.totalorder %s94, %s97
      %p103 = scmp.eq.s32.totalorder %s20, 0
      %p104 = por %p102, %p103
      %p105 = scmp.ne.s32.totalorder %s94, %s97
      %p106 = scmp.eq.s32.totalorder %s25, 5
      %p107 = por %p105, %p106
      %p108 = scmp.ne.s32.totalorder %s97, %s98
      %p109 = scmp.eq.s32.totalorder %s25, 0
      %p110 = por %p108, %p109
      %p111 = scmp.ne.s32.totalorder %s97, %s98
      %p112 = scmp.eq.s32.totalorder %s26, 5
      %p113 = por %p111, %p112
      %p115 = scmp.ne.s32.totalorder %s98, %s114
      %p116 = scmp.eq.s32.totalorder %s26, 0
      %p117 = por %p115, %p116
      %s118 = ssub.s32 %s27, %s39
      %p119 = scmp.eq.s32.totalorder %s118, 0
      %s121 = sadd.s32 %s120, 1
      %s122 = scalar_select %p119, %s120, %s121
      %p125 = pneg %p119
      %p126 = scmp.eq.s32.totalorder %s20, 5
      %p127 = por %p125, %p126
      %p128 = scmp.ne.s32.totalorder %s120, %s123
      %p129 = scmp.eq.s32.totalorder %s20, 0
      %p130 = por %p128, %p129
      %p131 = scmp.ne.s32.totalorder %s120, %s123
      %p132 = scmp.eq.s32.totalorder %s25, 5
      %p133 = por %p131, %p132
      %p134 = scmp.ne.s32.totalorder %s123, %s124
      %p135 = scmp.eq.s32.totalorder %s25, 0
      %p136 = por %p134, %p135
      %p137 = scmp.ne.s32.totalorder %s123, %s124
      %p138 = scmp.eq.s32.totalorder %s26, 5
      %p139 = por %p137, %p138
      %p141 = scmp.ne.s32.totalorder %s124, %s140
      %p142 = scmp.eq.s32.totalorder %s26, 0
      %p143 = por %p141, %p142
      %s144 = ssub.s32 %s27, %s39
      %p145 = scmp.eq.s32.totalorder %s144, 0
      %s147 = sadd.s32 %s146, 1
      %s148 = scalar_select %p145, %s146, %s147
      %p151 = pneg %p145
      %p152 = scmp.eq.s32.totalorder %s20, 5
      %p153 = por %p151, %p152
      %p154 = scmp.ne.s32.totalorder %s146, %s149
      %p155 = scmp.eq.s32.totalorder %s20, 0
      %p156 = por %p154, %p155
      %p157 = scmp.ne.s32.totalorder %s146, %s149
      %p158 = scmp.eq.s32.totalorder %s25, 5
      %p159 = por %p157, %p158
      %p160 = scmp.ne.s32.totalorder %s149, %s150
      %p161 = scmp.eq.s32.totalorder %s25, 0
      %p162 = por %p160, %p161
      %p163 = scmp.ne.s32.totalorder %s149, %s150
      %p164 = scmp.eq.s32.totalorder %s26, 5
      %p165 = por %p163, %p164
      %p167 = scmp.ne.s32.totalorder %s150, %s166
      %p168 = scmp.eq.s32.totalorder %s26, 0
      %p169 = por %p167, %p168
      %s170 = ssub.s32 %s27, %s39
      %p171 = scmp.eq.s32.totalorder %s170, 0
      %s173 = sadd.s32 %s172, 1
      %s174 = scalar_select %p171, %s172, %s173
      %p177 = pneg %p171
      %p178 = scmp.eq.s32.totalorder %s20, 5
      %p179 = por %p177, %p178
      %p180 = scmp.ne.s32.totalorder %s172, %s175
      %p181 = scmp.eq.s32.totalorder %s20, 0
      %p182 = por %p180, %p181
      %p183 = scmp.ne.s32.totalorder %s172, %s175
      %p184 = scmp.eq.s32.totalorder %s25, 5
      %p185 = por %p183, %p184
      %p186 = scmp.ne.s32.totalorder %s175, %s176
      %p187 = scmp.eq.s32.totalorder %s25, 0
      %p188 = por %p186, %p187
      %p189 = scmp.ne.s32.totalorder %s175, %s176
      %p190 = scmp.eq.s32.totalorder %s26, 5
      %p191 = por %p189, %p190
      %p193 = scmp.ne.s32.totalorder %s176, %s192
      %p194 = scmp.eq.s32.totalorder %s26, 0
      %p195 = por %p193, %p194
      %s197 = sadd.s32 %s196, 1
      %p200 = scmp.eq.s32.totalorder %s20, 5
      %p201 = scmp.ne.s32.totalorder %s196, %s198
      %p202 = scmp.eq.s32.totalorder %s20, 0
      %p203 = por %p201, %p202
      %p204 = scmp.ne.s32.totalorder %s196, %s198
      %p205 = scmp.eq.s32.totalorder %s25, 5
      %p206 = por %p204, %p205
      %p207 = scmp.ne.s32.totalorder %s198, %s199
      %p208 = scmp.eq.s32.totalorder %s25, 0
      %p209 = por %p207, %p208
      %p210 = scmp.ne.s32.totalorder %s198, %s199
      %p211 = scmp.eq.s32.totalorder %s26, 5
      %p212 = por %p210, %p211
      %p214 = scmp.ne.s32.totalorder %s199, %s213
      %p215 = scmp.eq.s32.totalorder %s26, 0
      %p216 = por %p214, %p215
      %s218 = sadd.s32 %s217, 1
      %p221 = scmp.eq.s32.totalorder %s20, 5
      %p222 = scmp.ne.s32.totalorder %s217, %s219
      %p223 = scmp.eq.s32.totalorder %s20, 0
      %p224 = por %p222, %p223
      %p225 = scmp.ne.s32.totalorder %s217, %s219
      %p226 = scmp.eq.s32.totalorder %s25, 5
      %p227 = por %p225, %p226
      %p228 = scmp.ne.s32.totalorder %s219, %s220
      %p229 = scmp.eq.s32.totalorder %s25, 0
      %p230 = por %p228, %p229
      %p231 = scmp.ne.s32.totalorder %s219, %s220
      %p232 = scmp.eq.s32.totalorder %s26, 5
      %p233 = por %p231, %p232
      %p235 = scmp.ne.s32.totalorder %s220, %s234
      %p236 = scmp.eq.s32.totalorder %s26, 0
      %p237 = por %p235, %p236
      %s238 = ssub.s32 %s27, %s39
      %s239 = ssub.s32 %s28, %s35
      %s240 = sor.u32 %s238, %s239
      %p241 = scmp.eq.s32.totalorder %s240, 0
      %s243 = sadd.s32 %s242, 1
      %s244 = scalar_select %p241, %s242, %s243
      %p247 = pneg %p241
      %p248 = scmp.eq.s32.totalorder %s20, 5
      %p249 = por %p247, %p248
      %p250 = scmp.ne.s32.totalorder %s242, %s245
      %p251 = scmp.eq.s32.totalorder %s20, 0
      %p252 = por %p250, %p251
      %p253 = scmp.ne.s32.totalorder %s242, %s245
      %p254 = scmp.eq.s32.totalorder %s25, 5
      %p255 = por %p253, %p254
      %p256 = scmp.ne.s32.totalorder %s245, %s246
      %p257 = scmp.eq.s32.totalorder %s25, 0
      %p258 = por %p256, %p257
      %p259 = scmp.ne.s32.totalorder %s245, %s246
      %p260 = scmp.eq.s32.totalorder %s26, 5
      %p261 = por %p259, %p260
      %p263 = scmp.ne.s32.totalorder %s246, %s262
      %p264 = scmp.eq.s32.totalorder %s26, 0
      %p265 = por %p263, %p264
      %s266 = ssub.s32 %s27, %s39
      %s267 = ssub.s32 %s28, %s35
      %s268 = sor.u32 %s266, %s267
      %p269 = scmp.eq.s32.totalorder %s268, 0
      %s271 = sadd.s32 %s270, 1
      %s272 = scalar_select %p269, %s270, %s271
      %p275 = pneg %p269
      %p276 = scmp.eq.s32.totalorder %s20, 5
      %p277 = por %p275, %p276
      %p278 = scmp.ne.s32.totalorder %s270, %s273
      %p279 = scmp.eq.s32.totalorder %s20, 0
      %p280 = por %p278, %p279
      %p281 = scmp.ne.s32.totalorder %s270, %s273
      %p282 = scmp.eq.s32.totalorder %s25, 5
      %p283 = por %p281, %p282
      %p284 = scmp.ne.s32.totalorder %s273, %s274
      %p285 = scmp.eq.s32.totalorder %s25, 0
      %p286 = por %p284, %p285
      %p287 = scmp.ne.s32.totalorder %s273, %s274
      %p288 = scmp.eq.s32.totalorder %s26, 5
      %p289 = por %p287, %p288
      %p291 = scmp.ne.s32.totalorder %s274, %s290
      %p292 = scmp.eq.s32.totalorder %s26, 0
      %p293 = por %p291, %p292
      %s294 = ssub.s32 %s27, %s39
      %p295 = scmp.eq.s32.totalorder %s294, 0
      %s297 = sadd.s32 %s296, 1
      %s298 = scalar_select %p295, %s296, %s297
      %p301 = pneg %p295
      %p302 = scmp.eq.s32.totalorder %s20, 5
      %p303 = por %p301, %p302
      %p304 = scmp.ne.s32.totalorder %s296, %s299
      %p305 = scmp.eq.s32.totalorder %s20, 0
      %p306 = por %p304, %p305
      %p307 = scmp.ne.s32.totalorder %s296, %s299
      %p308 = scmp.eq.s32.totalorder %s25, 5
      %p309 = por %p307, %p308
      %p310 = scmp.ne.s32.totalorder %s299, %s300
      %p311 = scmp.eq.s32.totalorder %s25, 0
      %p312 = por %p310, %p311
      %p313 = scmp.ne.s32.totalorder %s299, %s300
      %p314 = scmp.eq.s32.totalorder %s26, 5
      %p315 = por %p313, %p314
      %p317 = scmp.ne.s32.totalorder %s300, %s316
      %p318 = scmp.eq.s32.totalorder %s26, 0
      %p319 = por %p317, %p318
      %s320 = ssub.s32 %s27, %s39
      %p321 = scmp.eq.s32.totalorder %s320, 0
      %s323 = sadd.s32 %s322, 1
      %s324 = scalar_select %p321, %s322, %s323
      %p327 = pneg %p321
      %p328 = scmp.eq.s32.totalorder %s20, 5
      %p329 = por %p327, %p328
      %p330 = scmp.ne.s32.totalorder %s322, %s325
      %p331 = scmp.eq.s32.totalorder %s20, 0
      %p332 = por %p330, %p331
      %p333 = scmp.ne.s32.totalorder %s322, %s325
      %p334 = scmp.eq.s32.totalorder %s25, 5
      %p335 = por %p333, %p334
      %p336 = scmp.ne.s32.totalorder %s325, %s326
      %p337 = scmp.eq.s32.totalorder %s25, 0
      %p338 = por %p336, %p337
      %p339 = scmp.ne.s32.totalorder %s325, %s326
      %p340 = scmp.eq.s32.totalorder %s26, 5
      %p341 = por %p339, %p340
      %p343 = scmp.ne.s32.totalorder %s326, %s342
      %p344 = scmp.eq.s32.totalorder %s26, 0
      %p345 = por %p343, %p344
      %p346 = scmp.le.s32.totalorder 1, %s20
      %p347 = scmp.lt.s32.totalorder %s20, 7
      %p348 = pnand %p346, %p347
      %p349 = pneg %p348
      // Predicated region
      $region9: #{tpu_custom_call.1} parent=5 // pred_check
        _
      $region10: #{tpu_custom_call.1} parent=5 // pred_check_branch
        %351 = sbr.rel (%p348) target = $region12
      $region11: #{tpu_custom_call.1} parent=5 // pred_region
        %s352 = ssub.s32 %s20, 1
        // Predicated region
        $region13: #{tpu_custom_call.1} parent=11 // pred_check
          %p353 = pneg %p209
        $region14: #{tpu_custom_call.1} parent=11 // pred_check_branch
          %355 = sbr.rel (%p353) target = $region16
        $region15: #{tpu_custom_call.1} parent=11 // pred_region
          _
        $region16: #{tpu_custom_call.1} parent=11 // pred_fallthru
          _
        // Predicated region
        $region17: #{tpu_custom_call.1} parent=11 // pred_check
          %p356 = pneg %p230
        $region18: #{tpu_custom_call.1} parent=11 // pred_check_branch
          %358 = sbr.rel (%p356) target = $region20
        $region19: #{tpu_custom_call.1} parent=11 // pred_region
          _
        $region20: #{tpu_custom_call.1} parent=11 // pred_fallthru
          _
      $region12: #{tpu_custom_call.1} parent=5 // pred_fallthru
        _
      %p359 = scmp.lt.s32.totalorder %s20, 6
      // Predicated region
      $region21: #{tpu_custom_call.1} parent=5 // pred_check
        %p360 = pneg %p359
      $region22: #{tpu_custom_call.1} parent=5 // pred_check_branch
        %362 = sbr.rel (%p360) target = $region24
      $region23: #{tpu_custom_call.1} parent=5 // pred_region
        // Predicated region
        $region25: #{tpu_custom_call.1} parent=23 // pred_check
          %p363 = pneg %p52
        $region26: #{tpu_custom_call.1} parent=23 // pred_check_branch
          %365 = sbr.rel (%p363) target = $region28
        $region27: #{tpu_custom_call.1} parent=23 // pred_region
          %p366 = scmp.lt.s32.totalorder %s27, 1
          %s367 = scalar_select %p366, %s27, 1
          %s368 = smul.addr %s367, 3
          %s369 = smul.addr %s368, 8
          %s370 = scalar_lea.vmem %s0, %s369
        $region28: #{tpu_custom_call.1} parent=23 // pred_fallthru
          _
        // Predicated region
        $region29: #{tpu_custom_call.1} parent=23 // pred_check
          %p371 = pneg %p78
        $region30: #{tpu_custom_call.1} parent=23 // pred_check_branch
          %373 = sbr.rel (%p371) target = $region32
        $region31: #{tpu_custom_call.1} parent=23 // pred_region
          %p374 = scmp.lt.s32.totalorder %s27, 1
          %s375 = scalar_select %p374, %s27, 1
          %s376 = scalar_lea.vmem %s1, %s375
        $region32: #{tpu_custom_call.1} parent=23 // pred_fallthru
          _
        // Predicated region
        $region33: #{tpu_custom_call.1} parent=23 // pred_check
          %p377 = pneg %p104
        $region34: #{tpu_custom_call.1} parent=23 // pred_check_branch
          %379 = sbr.rel (%p377) target = $region36
        $region35: #{tpu_custom_call.1} parent=23 // pred_region
          %p380 = scmp.lt.s32.totalorder %s27, 1
          %s381 = scalar_select %p380, %s27, 1
          %s382 = smul.addr %s381, 8
          %s383 = scalar_lea.vmem %s2, %s382
        $region36: #{tpu_custom_call.1} parent=23 // pred_fallthru
          _
        // Predicated region
        $region37: #{tpu_custom_call.1} parent=23 // pred_check
          %p384 = pneg %p130
        $region38: #{tpu_custom_call.1} parent=23 // pred_check_branch
          %386 = sbr.rel (%p384) target = $region40
        $region39: #{tpu_custom_call.1} parent=23 // pred_region
          %p387 = scmp.lt.s32.totalorder %s27, 1
          %s388 = scalar_select %p387, %s27, 1
          %s389 = smul.addr %s388, 3
          %s390 = smul.addr %s389, 8
          %s391 = scalar_lea.vmem %s3, %s390
        $region40: #{tpu_custom_call.1} parent=23 // pred_fallthru
          _
        // Predicated region
        $region41: #{tpu_custom_call.1} parent=23 // pred_check
          %p392 = pneg %p156
        $region42: #{tpu_custom_call.1} parent=23 // pred_check_branch
          %394 = sbr.rel (%p392) target = $region44
        $region43: #{tpu_custom_call.1} parent=23 // pred_region
          %p395 = scmp.lt.s32.totalorder %s27, 1
          %s396 = scalar_select %p395, %s27, 1
          %s397 = smul.addr %s396, 3
          %s398 = smul.addr %s397, 8
          %s399 = scalar_lea.vmem %s4, %s398
        $region44: #{tpu_custom_call.1} parent=23 // pred_fallthru
          _
        // Predicated region
        $region45: #{tpu_custom_call.1} parent=23 // pred_check
          %p400 = pneg %p182
        $region46: #{tpu_custom_call.1} parent=23 // pred_check_branch
          %402 = sbr.rel (%p400) target = $region48
        $region47: #{tpu_custom_call.1} parent=23 // pred_region
          %p403 = scmp.lt.s32.totalorder %s27, 1
          %s404 = scalar_select %p403, %s27, 1
          %s405 = smul.addr %s404, 8
          %s406 = scalar_lea.vmem %s5, %s405
        $region48: #{tpu_custom_call.1} parent=23 // pred_fallthru
          _
        // Predicated region
        $region49: #{tpu_custom_call.1} parent=23 // pred_check
          %p407 = pneg %p252
        $region50: #{tpu_custom_call.1} parent=23 // pred_check_branch
          %409 = sbr.rel (%p407) target = $region52
        $region51: #{tpu_custom_call.1} parent=23 // pred_region
          %p410 = scmp.lt.s32.totalorder %s27, 1
          %s411 = scalar_select %p410, %s27, 1
          %p412 = scmp.lt.s32.totalorder %s28, 2
          %s413 = scalar_select %p412, %s28, 2
          %s414 = smul.addr %s413, 4
          %s415 = smul.addr %s411, 12
          %s416 = sadd.s32 %s414, %s415
          %s417 = smul.addr %s416, 8
          %s418 = scalar_lea.vmem %s8, %s417
        $region52: #{tpu_custom_call.1} parent=23 // pred_fallthru
          _
        // Predicated region
        $region53: #{tpu_custom_call.1} parent=23 // pred_check
          %p419 = pneg %p280
        $region54: #{tpu_custom_call.1} parent=23 // pred_check_branch
          %421 = sbr.rel (%p419) target = $region56
        $region55: #{tpu_custom_call.1} parent=23 // pred_region
          %p422 = scmp.lt.s32.totalorder %s27, 1
          %s423 = scalar_select %p422, %s27, 1
          %p424 = scmp.lt.s32.totalorder %s28, 2
          %s425 = scalar_select %p424, %s28, 2
          %s426 = smul.addr %s425, 19
          %s427 = smul.addr %s423, 57
          %s428 = sadd.s32 %s426, %s427
          %s429 = smul.addr %s428, 8
          %s430 = scalar_lea.vmem %s9, %s429
        $region56: #{tpu_custom_call.1} parent=23 // pred_fallthru
          _
        // Predicated region
        $region57: #{tpu_custom_call.1} parent=23 // pred_check
          %p431 = pneg %p306
        $region58: #{tpu_custom_call.1} parent=23 // pred_check_branch
          %433 = sbr.rel (%p431) target = $region60
        $region59: #{tpu_custom_call.1} parent=23 // pred_region
          %p434 = scmp.lt.s32.totalorder %s27, 1
          %s435 = scalar_select %p434, %s27, 1
          %s436 = smul.addr %s435, 9
          %s437 = smul.addr %s436, 8
          %s438 = scalar_lea.vmem %s10, %s437
        $region60: #{tpu_custom_call.1} parent=23 // pred_fallthru
          _
      $region24: #{tpu_custom_call.1} parent=5 // pred_fallthru
        _
      %p439 = scmp.le.s32.totalorder 1, %s20
      %p440 = scmp.lt.s32.totalorder %s20, 7
      %p441 = pnand %p439, %p440
      %p442 = pneg %p441
      // Predicated region
      $region61: #{tpu_custom_call.1} parent=5 // pred_check
        _
      $region62: #{tpu_custom_call.1} parent=5 // pred_check_branch
        %444 = sbr.rel (%p441) target = $region64
      $region63: #{tpu_custom_call.1} parent=5 // pred_region
        %s445 = ssub.s32 %s20, 1
        %p446 = scmp.lt.s32.totalorder %s29, 1
        %s447 = scalar_select %p446, %s29, 1
        %s448 = smul.addr %s447, 3
        %s449 = smul.addr %s448, 8
        %s450 = scalar_lea.vmem %s0, %s449
        %p451 = pneg %p58
        %p452 = pneg %p55
        %p453 = scmp.lt.s32.totalorder %s29, 1
        %s454 = scalar_select %p453, %s29, 1
        %s455 = scalar_lea.vmem %s1, %s454
        %p456 = pneg %p84
        %p457 = pneg %p81
        %p458 = scmp.lt.s32.totalorder %s29, 1
        %s459 = scalar_select %p458, %s29, 1
        %s460 = smul.addr %s459, 8
        %s461 = scalar_lea.vmem %s2, %s460
        %p462 = pneg %p110
        %p463 = pneg %p107
        %p464 = scmp.lt.s32.totalorder %s29, 1
        %s465 = scalar_select %p464, %s29, 1
        %s466 = smul.addr %s465, 3
        %s467 = smul.addr %s466, 8
        %s468 = scalar_lea.vmem %s3, %s467
        %p469 = pneg %p136
        %p470 = pneg %p133
        %p471 = scmp.lt.s32.totalorder %s29, 1
        %s472 = scalar_select %p471, %s29, 1
        %s473 = smul.addr %s472, 3
        %s474 = smul.addr %s473, 8
        %s475 = scalar_lea.vmem %s4, %s474
        %p476 = pneg %p162
        %p477 = pneg %p159
        %p478 = scmp.lt.s32.totalorder %s29, 1
        %s479 = scalar_select %p478, %s29, 1
        %s480 = smul.addr %s479, 8
        %s481 = scalar_lea.vmem %s5, %s480
        %p482 = pneg %p188
        %p483 = pneg %p185
        %p484 = pneg %p209
        %p485 = pneg %p206
        %p486 = pneg %p230
        %p487 = pneg %p227
        %p488 = scmp.lt.s32.totalorder %s29, 1
        %s489 = scalar_select %p488, %s29, 1
        %p490 = scmp.lt.s32.totalorder %s30, 2
        %s491 = scalar_select %p490, %s30, 2
        %s492 = smul.addr %s491, 4
        %s493 = smul.addr %s489, 12
        %s494 = sadd.s32 %s492, %s493
        %s495 = smul.addr %s494, 8
        %s496 = scalar_lea.vmem %s8, %s495
        %p497 = pneg %p258
        %p498 = pneg %p255
        %p499 = scmp.lt.s32.totalorder %s29, 1
        %s500 = scalar_select %p499, %s29, 1
        %p501 = scmp.lt.s32.totalorder %s30, 2
        %s502 = scalar_select %p501, %s30, 2
        %s503 = smul.addr %s502, 19
        %s504 = smul.addr %s500, 57
        %s505 = sadd.s32 %s503, %s504
        %s506 = smul.addr %s505, 8
        %s507 = scalar_lea.vmem %s9, %s506
        %p508 = pneg %p286
        %p509 = pneg %p283
        %p510 = scmp.lt.s32.totalorder %s29, 1
        %s511 = scalar_select %p510, %s29, 1
        %s512 = smul.addr %s511, 9
        %s513 = smul.addr %s512, 8
        %s514 = scalar_lea.vmem %s10, %s513
        %p515 = pneg %p312
        %p516 = pneg %p309
        %p517 = pneg %p338
        %p518 = pneg %p335
        %s519 = sand.u32 %s325, 1
        %s520 = scalar_lea.sflag [#allocation8], %s519
        %s521 = sand.u32 %s325, 1
        %s522 = smul.addr %s521, 2
        %s523 = scalar_lea.vmem [#allocation7], %s522
        %p524 = scmp.lt.s32.totalorder %s29, 1
        %s525 = scalar_select %p524, %s29, 1
        %s526 = smul.addr %s525, 3
        %s527 = smul.addr %s526, 8
        %s528 = scalar_lea.vmem %s0, %s527
        %p529 = scmp.lt.s32.totalorder %s29, 1
        %s530 = scalar_select %p529, %s29, 1
        %s531 = scalar_lea.vmem %s1, %s530
        %p532 = scmp.lt.s32.totalorder %s29, 1
        %s533 = scalar_select %p532, %s29, 1
        %s534 = smul.addr %s533, 8
        %s535 = scalar_lea.vmem %s2, %s534
        %p536 = scmp.lt.s32.totalorder %s29, 1
        %s537 = scalar_select %p536, %s29, 1
        %s538 = smul.addr %s537, 3
        %s539 = smul.addr %s538, 8
        %s540 = scalar_lea.vmem %s3, %s539
        %p541 = scmp.lt.s32.totalorder %s29, 1
        %s542 = scalar_select %p541, %s29, 1
        %s543 = smul.addr %s542, 3
        %s544 = smul.addr %s543, 8
        %s545 = scalar_lea.vmem %s4, %s544
        %p546 = scmp.lt.s32.totalorder %s29, 1
        %s547 = scalar_select %p546, %s29, 1
        %s548 = smul.addr %s547, 8
        %s549 = scalar_lea.vmem %s5, %s548
        %p550 = scmp.lt.s32.totalorder %s29, 1
        %s551 = scalar_select %p550, %s29, 1
        %p552 = scmp.lt.s32.totalorder %s30, 2
        %s553 = scalar_select %p552, %s30, 2
        %s554 = smul.addr %s553, 4
        %s555 = smul.addr %s551, 12
        %s556 = sadd.s32 %s554, %s555
        %s557 = smul.addr %s556, 8
        %s558 = scalar_lea.vmem %s8, %s557
        %p559 = scmp.lt.s32.totalorder %s29, 1
        %s560 = scalar_select %p559, %s29, 1
        %p561 = scmp.lt.s32.totalorder %s30, 2
        %s562 = scalar_select %p561, %s30, 2
        %s563 = smul.addr %s562, 19
        %s564 = smul.addr %s560, 57
        %s565 = sadd.s32 %s563, %s564
        %s566 = smul.addr %s565, 8
        %s567 = scalar_lea.vmem %s9, %s566
        %p568 = scmp.lt.s32.totalorder %s29, 1
        %s569 = scalar_select %p568, %s29, 1
        %s570 = smul.addr %s569, 9
        %s571 = smul.addr %s570, 8
        %s572 = scalar_lea.vmem %s10, %s571
        %p573 = scmp.eq.s32.totalorder %s30, 0
        // Predicated region
        $region65: #{tpu_custom_call.1} parent=63 // pred_check
          %p574 = pneg %p573
        $region66: #{tpu_custom_call.1} parent=63 // pred_check_branch
          %576 = sbr.rel (%p574) target = $region68
        $region67: #{tpu_custom_call.1} parent=63 // pred_region
          %v577 = vld [vmem:[%s535] sm:$0xff]
          %v578 = vld [vmem:[%s6] sm:$0x1f]
          %v579 = vld [vmem:[%s7] sm:$0x1]
          %v581 = vlaneseq
          %v582 = vshrl.u32 %v581, 7
          %v583 = vsub.s32 0, %v582
          %v584 = vrot.slane %v579, %v583
          %vm586 = vcmask 39936
          %v588 = vsel %vm586, %v577, 0
          %vm590 = vcmask 1044480
          %v592 = vsel %vm590, %v578, 0
          %594 = vmatprep.subr.mxu0 0.0
          %595 = vmatpush1.msra.mxu0 0.0
          %596 = vmatprep.subr.mxu0 0.0
          %597 = vmatpush1.msra.mxu0 0.0
          %598 = vmatprep.subr.mxu0 0.0
          %599 = vmatpush1.msra.mxu0 0.0
          %600 = vmatprep.subr.mxu0 0.0
          %601 = vmatpush1.msra.mxu0 0.0
          %602 = vmatprep.subr.mxu0 0.0
          %603 = vmatpush1.msra.mxu0 0.0
          %604 = vmatprep.subr.mxu0 0.0
          %605 = vmatpush1.msra.mxu0 0.0
          %606 = vmatprep.subr.mxu0 0.0
          %607 = vmatpush1.msra.mxu0 0.0
          %608 = vmatprep.subr.mxu0 0.0
          %609 = vmatpush1.msra.mxu0 0.0
          %610 = vmatprep.subr.mxu0 0.0
          %611 = vmatpush1.msra.mxu0 0.0
          %612 = vmatprep.subr.mxu0 0.0
          %613 = vmatpush1.msra.mxu0 0.0
          %614 = vmatprep.subr.mxu0 0.0
          %615 = vmatpush1.msra.mxu0 0.0
          %616 = vmatprep.subr.mxu0 0.0
          %617 = vmatpush1.msra.mxu0 0.0
          %618 = vmatprep.subr.mxu0 0.0
          %619 = vmatpush1.msra.mxu0 0.0
          %620 = vmatprep.subr.mxu0 0.0
          %621 = vmatpush1.msra.mxu0 0.0
          %622 = vmatprep.subr.mxu0 0.0
          %623 = vmatpush1.msra.mxu0 0.0
          %624 = vmatprep.subr.mxu0 0.0
          %625 = vmatpush1.msra.mxu0 %v592
          %626 = vmatprep.subr.mxu0 0.0
          %627 = vmatpush2.msra.mxu0 0.0
          %628 = vmatprep.subr.mxu0 0.0
          %629 = vmatpush2.msra.mxu0 0.0
          %630 = vmatprep.subr.mxu0 0.0
          %631 = vmatpush2.msra.mxu0 0.0
          %632 = vmatprep.subr.mxu0 0.0
          %633 = vmatpush2.msra.mxu0 0.0
          %634 = vmatprep.subr.mxu0 0.0
          %635 = vmatpush2.msra.mxu0 0.0
          %636 = vmatprep.subr.mxu0 0.0
          %637 = vmatpush2.msra.mxu0 0.0
          %638 = vmatprep.subr.mxu0 0.0
          %639 = vmatpush2.msra.mxu0 0.0
          %640 = vmatprep.subr.mxu0 0.0
          %641 = vmatpush2.msra.mxu0 0.0
          %642 = vmatprep.subr.mxu0 0.0
          %643 = vmatpush2.msra.mxu0 0.0
          %644 = vmatprep.subr.mxu0 0.0
          %645 = vmatpush2.msra.mxu0 0.0
          %646 = vmatprep.subr.mxu0 0.0
          %647 = vmatpush2.msra.mxu0 0.0
          %648 = vmatprep.subr.mxu0 0.0
          %649 = vmatpush2.msra.mxu0 0.0
          %650 = vmatprep.subr.mxu0 0.0
          %651 = vmatpush2.msra.mxu0 0.0
          %652 = vmatprep.subr.mxu0 0.0
          %653 = vmatpush2.msra.mxu0 0.0
          %654 = vmatprep.subr.mxu0 0.0
          %655 = vmatpush2.msra.mxu0 0.0
          %656 = vmatprep.subr.mxu0 0.0
          %657 = vmatpush2.msra.mxu0 0.0
          %658 = vmatprep.mubr.f32.mxu0 0.0
          %659 = vmatmul.mubr.f32.gmra.mxu0 %v588
          %v660 = vpop.f32.mrf.mxu0
          %v661 = vadd.f32 %v584, %v660
          %v662 = vpop.f32.mrf.mxu0
          %663 = vdwg.mxu0
          %vm664 = vcmask 261120
          %665 = vst.msk [vmem:[#allocation2] sm:$0xff] %vm664, %v661
          %v666 = vld [vmem:[%s528] sm:$0xff]
          %v667 = vld [vmem:[%s528 + $0x8] sm:$0xff]
          %v668 = vld [vmem:[%s528 + $0x10] sm:$0xff]
          %v669 = vlaneseq
          %v670 = vand.u32 %v669, 127
          %671 = vset.pattern.permute.xlu0 0
          %672 = vperm.xlu0 %671, %v666
          %v673 = vpop.permute.xlu0 %672
          %674 = vset.pattern.permute.xlu0 0
          %675 = vperm.xlu0 %674, %v667
          %v676 = vpop.permute.xlu0 %675
          %677 = vset.pattern.permute.xlu0 0
          %678 = vperm.xlu0 %677, %v668
          %v679 = vpop.permute.xlu0 %678
          %vm680 = vcmp.eq.s32.totalorder %v670, %v673
          %vm681 = vcmp.eq.s32.totalorder %v670, %v676
          %vm682 = vcmp.eq.s32.totalorder %v670, %v679
          %v683 = vadd.s32 %v666, 8
          %v684 = vadd.s32 %v667, 8
          %v685 = vadd.s32 %v668, 8
          %686 = vset.pattern.permute.xlu0 1
          %687 = vperm.xlu0 %686, %v683
          %v688 = vpop.permute.xlu0 %687
          %689 = vset.pattern.permute.xlu0 1
          %690 = vperm.xlu0 %689, %v684
          %v691 = vpop.permute.xlu0 %690
          %692 = vset.pattern.permute.xlu0 1
          %693 = vperm.xlu0 %692, %v685
          %v694 = vpop.permute.xlu0 %693
          %vm695 = vcmp.eq.s32.totalorder %v670, %v688
          %vm696 = vcmp.eq.s32.totalorder %v670, %v691
          %vm697 = vcmp.eq.s32.totalorder %v670, %v694
          %vm698 = vmor %vm680, %vm695
          %vm699 = vmor %vm681, %vm696
          %vm700 = vmor %vm682, %vm697
          %v701 = vsel %vm698, 1, 0
          %v702 = vsel %vm699, 1, 0
          %v703 = vsel %vm700, 1, 0
          %v704 = vcvt.s32.f32 %v701
          %v705 = vcvt.s32.f32 %v702
          %v706 = vcvt.s32.f32 %v703
          %vm707 = vcmask 130048
          %708 = vst.msk [vmem:[#allocation3] sm:$0xff] %vm707, %v704
          %709 = vst.msk [vmem:[#allocation3 + $0x8] sm:$0xff] %vm707, %v705
          %710 = vst.msk [vmem:[#allocation3 + $0x10] sm:$0xff] %vm707, %v706
          %v711 = vld [vmem:[%s540] sm:$0xff]
          %v712 = vld [vmem:[%s540 + $0x8] sm:$0xff]
          %v713 = vld [vmem:[%s540 + $0x10] sm:$0xff]
          %717 = vrot.lane.b32.xlu0 %v711, 16
          %v718 = vpop.permute.xlu0 %717
          %719 = vrot.lane.b32.xlu0 %v712, 16
          %v720 = vpop.permute.xlu0 %719
          %721 = vrot.lane.b32.xlu0 %v713, 16
          %v722 = vpop.permute.xlu0 %721
          %vm726 = vcmask 154752
          %727 = vst.msk [vmem:[#allocation3] sm:$0xff] %vm726, %v718
          %728 = vst.msk [vmem:[#allocation3 + $0x8] sm:$0xff] %vm726, %v720
          %729 = vst.msk [vmem:[#allocation3 + $0x10] sm:$0xff] %vm726, %v722
          %vm730 = vcmask 162968
          %731 = vst.msk [vmem:[#allocation3] sm:$0xff] %vm730, 1.0
          %732 = vst.msk [vmem:[#allocation3 + $0x8] sm:$0xff] %vm730, 1.0
          %733 = vst.msk [vmem:[#allocation3 + $0x10] sm:$0xff] %vm730, 1.0
          %v734 = vlaneseq
          %v735 = vshrl.u32 %v734, 7
          %v736 = vld [vmem:[%s531] sm:$0x1]
          %v737 = vlaneseq
          %v738 = vshrl.u32 %v737, 7
          %v739 = vsub.s32 0, %v738
          %v740 = vrot.slane %v736, %v739
          %vm741 = vcmp.eq.s32.totalorder %v735, %v740
          %v742 = vsel %vm741, 1, 0
          %v743 = vcvt.s32.f32 %v742
          %vm744 = vcmask 195584
          %745 = vst.msk [vmem:[#allocation4] sm:$0xff] %vm744, %v743
          %v746 = vld [vmem:[%s535] sm:$0xff]
          %748 = vrot.lane.b32.xlu0 %v746, 64
          %v749 = vpop.permute.xlu0 %748
          %vm751 = vcmask 564736
          %752 = vst.msk [vmem:[#allocation6] sm:$0xff] %vm751, %v749
          %vm753 = vcmask 572968
          %754 = vst.msk [vmem:[#allocation6] sm:$0xff] %vm753, 1.0
        $region68: #{tpu_custom_call.1} parent=63 // pred_fallthru
          _
        %v755 = vld [vmem:[#allocation2] sm:$0xff]
        %v756 = vld [vmem:[%s558] sm:$0xff]
        %v757 = vld [vmem:[%s558 + $0x8] sm:$0xff]
        %v758 = vld [vmem:[%s558 + $0x10] sm:$0xff]
        %v759 = vld [vmem:[%s558 + $0x18] sm:$0xff]
        %vm760 = vcmask 261120
        %v762 = vsel %vm760, %v755, 0
        %764 = vmatprep.subr.mxu0 0.0
        %765 = vmatpush1.msra.mxu0 0.0
        %766 = vmatprep.subr.mxu0 0.0
        %767 = vmatpush1.msra.mxu0 0.0
        %768 = vmatprep.subr.mxu0 0.0
        %769 = vmatpush1.msra.mxu0 0.0
        %770 = vmatprep.subr.mxu0 0.0
        %771 = vmatpush1.msra.mxu0 0.0
        %772 = vmatprep.subr.mxu0 0.0
        %773 = vmatpush1.msra.mxu0 0.0
        %774 = vmatprep.subr.mxu0 0.0
        %775 = vmatpush1.msra.mxu0 0.0
        %776 = vmatprep.subr.mxu0 0.0
        %777 = vmatpush1.msra.mxu0 0.0
        %778 = vmatprep.subr.mxu0 0.0
        %779 = vmatpush1.msra.mxu0 0.0
        %780 = vmatprep.subr.mxu0 0.0
        %781 = vmatpush1.msra.mxu0 0.0
        %782 = vmatprep.subr.mxu0 0.0
        %783 = vmatpush1.msra.mxu0 0.0
        %784 = vmatprep.subr.mxu0 0.0
        %785 = vmatpush1.msra.mxu0 0.0
        %786 = vmatprep.subr.mxu0 0.0
        %787 = vmatpush1.msra.mxu0 0.0
        %788 = vmatprep.subr.mxu0 0.0
        %789 = vmatpush1.msra.mxu0 %v759
        %790 = vmatprep.subr.mxu0 0.0
        %791 = vmatpush1.msra.mxu0 %v758
        %792 = vmatprep.subr.mxu0 0.0
        %793 = vmatpush1.msra.mxu0 %v757
        %794 = vmatprep.subr.mxu0 0.0
        %795 = vmatpush1.msra.mxu0 %v756
        %796 = vmatprep.subr.mxu0 0.0
        %797 = vmatpush2.msra.mxu0 0.0
        %798 = vmatprep.subr.mxu0 0.0
        %799 = vmatpush2.msra.mxu0 0.0
        %800 = vmatprep.subr.mxu0 0.0
        %801 = vmatpush2.msra.mxu0 0.0
        %802 = vmatprep.subr.mxu0 0.0
        %803 = vmatpush2.msra.mxu0 0.0
        %804 = vmatprep.subr.mxu0 0.0
        %805 = vmatpush2.msra.mxu0 0.0
        %806 = vmatprep.subr.mxu0 0.0
        %807 = vmatpush2.msra.mxu0 0.0
        %808 = vmatprep.subr.mxu0 0.0
        %809 = vmatpush2.msra.mxu0 0.0
        %810 = vmatprep.subr.mxu0 0.0
        %811 = vmatpush2.msra.mxu0 0.0
        %812 = vmatprep.subr.mxu0 0.0
        %813 = vmatpush2.msra.mxu0 0.0
        %814 = vmatprep.subr.mxu0 0.0
        %815 = vmatpush2.msra.mxu0 0.0
        %816 = vmatprep.subr.mxu0 0.0
        %817 = vmatpush2.msra.mxu0 0.0
        %818 = vmatprep.subr.mxu0 0.0
        %819 = vmatpush2.msra.mxu0 0.0
        %820 = vmatprep.subr.mxu0 0.0
        %821 = vmatpush2.msra.mxu0 0.0
        %822 = vmatprep.subr.mxu0 0.0
        %823 = vmatpush2.msra.mxu0 0.0
        %824 = vmatprep.subr.mxu0 0.0
        %825 = vmatpush2.msra.mxu0 0.0
        %826 = vmatprep.subr.mxu0 0.0
        %827 = vmatpush2.msra.mxu0 0.0
        %828 = vmatprep.mubr.f32.mxu0 0.0
        %829 = vmatmul.mubr.f32.gmra.mxu0 %v762
        %v830 = vpop.f32.mrf.mxu0
        %v831 = vadd.f32 0.0, %v830
        %v832 = vpop.f32.mrf.mxu0
        %833 = vdwg.mxu0
        %834 = vst.msk [vmem:[#allocation5] sm:$0xff] %vm760, %v831
        %836 = vrot.lane.b32.xlu0 %v831, 96
        %v837 = vpop.permute.xlu0 %836
        %839 = vst.msk [vmem:[#allocation5 + $0x8] sm:$0xff] %vm760, %v837
        %v840 = vld [vmem:[%s567] sm:$0xf]
        %vm841 = vcmask 257024
        %842 = vst.msk [vmem:[#allocation5 + $0x10] sm:$0xf] %vm841, %v840
        %v843 = vld [vmem:[#allocation3] sm:$0xff]
        %v844 = vld [vmem:[#allocation3 + $0x8] sm:$0xff]
        %v845 = vld [vmem:[#allocation3 + $0x10] sm:$0xff]
        %v846 = vld [vmem:[#allocation5] sm:$0xff]
        %v847 = vld [vmem:[#allocation5 + $0x8] sm:$0xff]
        %v848 = vld [vmem:[#allocation5 + $0x10] sm:$0xf]
        %vm849 = vcmask 162816
        %v851 = vsel %vm849, %v843, 0
        %v854 = vsel %vm849, %v844, 0
        %v857 = vsel %vm849, %v845, 0
        %vm859 = vcmask 1043456
        %v861 = vsel %vm859, %v848, 0
        %863 = vmatprep.subr.mxu0 0.0
        %864 = vmatpush1.msra.mxu0 0.0
        %865 = vmatprep.subr.mxu0 0.0
        %866 = vmatpush1.msra.mxu0 0.0
        %867 = vmatprep.subr.mxu0 0.0
        %868 = vmatpush1.msra.mxu0 0.0
        %869 = vmatprep.subr.mxu0 0.0
        %870 = vmatpush1.msra.mxu0 0.0
        %871 = vmatprep.subr.mxu0 0.0
        %872 = vmatpush1.msra.mxu0 0.0
        %873 = vmatprep.subr.mxu0 0.0
        %874 = vmatpush1.msra.mxu0 0.0
        %875 = vmatprep.subr.mxu0 0.0
        %876 = vmatpush1.msra.mxu0 0.0
        %877 = vmatprep.subr.mxu0 0.0
        %878 = vmatpush1.msra.mxu0 0.0
        %879 = vmatprep.subr.mxu0 0.0
        %880 = vmatpush1.msra.mxu0 0.0
        %881 = vmatprep.subr.mxu0 0.0
        %882 = vmatpush1.msra.mxu0 0.0
        %883 = vmatprep.subr.mxu0 0.0
        %884 = vmatpush1.msra.mxu0 0.0
        %885 = vmatprep.subr.mxu0 0.0
        %886 = vmatpush1.msra.mxu0 0.0
        %887 = vmatprep.subr.mxu0 0.0
        %888 = vmatpush1.msra.mxu0 0.0
        %889 = vmatprep.subr.mxu0 0.0
        %890 = vmatpush1.msra.mxu0 %v861
        %891 = vmatprep.subr.mxu0 0.0
        %892 = vmatpush1.msra.mxu0 %v847
        %893 = vmatprep.subr.mxu0 0.0
        %894 = vmatpush1.msra.mxu0 %v846
        %895 = vmatprep.subr.mxu0 0.0
        %896 = vmatpush2.msra.mxu0 0.0
        %897 = vmatprep.subr.mxu0 0.0
        %898 = vmatpush2.msra.mxu0 0.0
        %899 = vmatprep.subr.mxu0 0.0
        %900 = vmatpush2.msra.mxu0 0.0
        %901 = vmatprep.subr.mxu0 0.0
        %902 = vmatpush2.msra.mxu0 0.0
        %903 = vmatprep.subr.mxu0 0.0
        %904 = vmatpush2.msra.mxu0 0.0
        %905 = vmatprep.subr.mxu0 0.0
        %906 = vmatpush2.msra.mxu0 0.0
        %907 = vmatprep.subr.mxu0 0.0
        %908 = vmatpush2.msra.mxu0 0.0
        %909 = vmatprep.subr.mxu0 0.0
        %910 = vmatpush2.msra.mxu0 0.0
        %911 = vmatprep.subr.mxu0 0.0
        %912 = vmatpush2.msra.mxu0 0.0
        %913 = vmatprep.subr.mxu0 0.0
        %914 = vmatpush2.msra.mxu0 0.0
        %915 = vmatprep.subr.mxu0 0.0
        %916 = vmatpush2.msra.mxu0 0.0
        %917 = vmatprep.subr.mxu0 0.0
        %918 = vmatpush2.msra.mxu0 0.0
        %919 = vmatprep.subr.mxu0 0.0
        %920 = vmatpush2.msra.mxu0 0.0
        %921 = vmatprep.subr.mxu0 0.0
        %922 = vmatpush2.msra.mxu0 0.0
        %923 = vmatprep.subr.mxu0 0.0
        %924 = vmatpush2.msra.mxu0 0.0
        %925 = vmatprep.subr.mxu0 0.0
        %926 = vmatpush2.msra.mxu0 0.0
        %927 = vmatprep.mubr.f32.mxu0 0.0
        %928 = vmatmul.mubr.f32.gmra.mxu0 %v851
        %v929 = vpop.f32.mrf.mxu0
        %v930 = vadd.f32 0.0, %v929
        %v931 = vpop.f32.mrf.mxu0
        %932 = vmatprep.mubr.f32.mxu0 0.0
        %933 = vmatmul.mubr.f32.gmra.mxu0 %v854
        %v934 = vpop.f32.mrf.mxu0
        %v935 = vadd.f32 0.0, %v934
        %v936 = vpop.f32.mrf.mxu0
        %937 = vmatprep.mubr.f32.mxu0 0.0
        %938 = vmatmul.mubr.f32.gmra.mxu0 %v857
        %v939 = vpop.f32.mrf.mxu0
        %v940 = vadd.f32 0.0, %v939
        %v941 = vpop.f32.mrf.mxu0
        %942 = vdwg.mxu0
        %v943 = vsub.f32 0.0, %v930
        %v944 = vsub.f32 0.0, %v935
        %v945 = vsub.f32 0.0, %v940
        %v946 = vmul.f32 %v943, 1.442695
        %v947 = vpow.pop %v946
        %v948 = vmul.f32 %v944, 1.442695
        %v949 = vpow.pop %v948
        %v950 = vmul.f32 %v945, 1.442695
        %v951 = vpow.pop %v950
        %v952 = vadd.f32 %v947, 1.0
        %v953 = vadd.f32 %v949, 1.0
        %v954 = vadd.f32 %v951, 1.0
        %v955 = vrcp.pop %v952
        %v956 = vmul.f32 1.0, %v955
        %v957 = vrcp.pop %v953
        %v958 = vmul.f32 1.0, %v957
        %v959 = vrcp.pop %v954
        %v960 = vmul.f32 1.0, %v959
        %v961 = vmul.f32 %v930, %v956
        %v962 = vmul.f32 %v935, %v958
        %v963 = vmul.f32 %v940, %v960
        %v964 = vld [vmem:[%s567 + $0x8] sm:$0xff]
        %v965 = vld [vmem:[%s567 + $0x10] sm:$0xff]
        %v966 = vld [vmem:[%s567 + $0x18] sm:$0xff]
        %v967 = vld [vmem:[%s567 + $0x20] sm:$0xff]
        %v968 = vld [vmem:[%s567 + $0x28] sm:$0x1]
        %v969 = vld [vmem:[%s567 + $0x29] sm:$0x1]
        %v970 = vld [vmem:[%s567 + $0x2a] sm:$0x1]
        %v971 = vld [vmem:[%s567 + $0x2b] sm:$0x1]
        %v972 = vlaneseq
        %v973 = vshrl.u32 %v972, 7
        %v974 = vsub.s32 0, %v973
        %v975 = vrot.slane %v968, %v974
        %v977 = vsel %vm760, %v961, 0
        %v980 = vsel %vm760, %v962, 0
        %v983 = vsel %vm760, %v963, 0
        %985 = vmatprep.subr.mxu0 0.0
        %986 = vmatpush1.msra.mxu0 0.0
        %987 = vmatprep.subr.mxu0 0.0
        %988 = vmatpush1.msra.mxu0 0.0
        %989 = vmatprep.subr.mxu0 0.0
        %990 = vmatpush1.msra.mxu0 0.0
        %991 = vmatprep.subr.mxu0 0.0
        %992 = vmatpush1.msra.mxu0 0.0
        %993 = vmatprep.subr.mxu0 0.0
        %994 = vmatpush1.msra.mxu0 0.0
        %995 = vmatprep.subr.mxu0 0.0
        %996 = vmatpush1.msra.mxu0 0.0
        %997 = vmatprep.subr.mxu0 0.0
        %998 = vmatpush1.msra.mxu0 0.0
        %999 = vmatprep.subr.mxu0 0.0
        %1000 = vmatpush1.msra.mxu0 0.0
        %1001 = vmatprep.subr.mxu0 0.0
        %1002 = vmatpush1.msra.mxu0 0.0
        %1003 = vmatprep.subr.mxu0 0.0
        %1004 = vmatpush1.msra.mxu0 0.0
        %1005 = vmatprep.subr.mxu0 0.0
        %1006 = vmatpush1.msra.mxu0 0.0
        %1007 = vmatprep.subr.mxu0 0.0
        %1008 = vmatpush1.msra.mxu0 0.0
        %1009 = vmatprep.subr.mxu0 0.0
        %1010 = vmatpush1.msra.mxu0 %v967
        %1011 = vmatprep.subr.mxu0 0.0
        %1012 = vmatpush1.msra.mxu0 %v966
        %1013 = vmatprep.subr.mxu0 0.0
        %1014 = vmatpush1.msra.mxu0 %v965
        %1015 = vmatprep.subr.mxu0 0.0
        %1016 = vmatpush1.msra.mxu0 %v964
        %1017 = vmatprep.subr.mxu0 0.0
        %1018 = vmatpush2.msra.mxu0 0.0
        %1019 = vmatprep.subr.mxu0 0.0
        %1020 = vmatpush2.msra.mxu0 0.0
        %1021 = vmatprep.subr.mxu0 0.0
        %1022 = vmatpush2.msra.mxu0 0.0
        %1023 = vmatprep.subr.mxu0 0.0
        %1024 = vmatpush2.msra.mxu0 0.0
        %1025 = vmatprep.subr.mxu0 0.0
        %1026 = vmatpush2.msra.mxu0 0.0
        %1027 = vmatprep.subr.mxu0 0.0
        %1028 = vmatpush2.msra.mxu0 0.0
        %1029 = vmatprep.subr.mxu0 0.0
        %1030 = vmatpush2.msra.mxu0 0.0
        %1031 = vmatprep.subr.mxu0 0.0
        %1032 = vmatpush2.msra.mxu0 0.0
        %1033 = vmatprep.subr.mxu0 0.0
        %1034 = vmatpush2.msra.mxu0 0.0
        %1035 = vmatprep.subr.mxu0 0.0
        %1036 = vmatpush2.msra.mxu0 0.0
        %1037 = vmatprep.subr.mxu0 0.0
        %1038 = vmatpush2.msra.mxu0 0.0
        %1039 = vmatprep.subr.mxu0 0.0
        %1040 = vmatpush2.msra.mxu0 0.0
        %1041 = vmatprep.subr.mxu0 0.0
        %1042 = vmatpush2.msra.mxu0 0.0
        %1043 = vmatprep.subr.mxu0 0.0
        %1044 = vmatpush2.msra.mxu0 0.0
        %1045 = vmatprep.subr.mxu0 0.0
        %1046 = vmatpush2.msra.mxu0 0.0
        %1047 = vmatprep.subr.mxu0 0.0
        %1048 = vmatpush2.msra.mxu0 0.0
        %1049 = vmatprep.mubr.f32.mxu0 0.0
        %1050 = vmatmul.mubr.f32.gmra.mxu0 %v977
        %v1051 = vpop.f32.mrf.mxu0
        %v1052 = vadd.f32 %v975, %v1051
        %v1053 = vpop.f32.mrf.mxu0
        %1054 = vmatprep.mubr.f32.mxu0 0.0
        %1055 = vmatmul.mubr.f32.gmra.mxu0 %v980
        %v1056 = vpop.f32.mrf.mxu0
        %v1057 = vadd.f32 %v975, %v1056
        %v1058 = vpop.f32.mrf.mxu0
        %1059 = vmatprep.mubr.f32.mxu0 0.0
        %1060 = vmatmul.mubr.f32.gmra.mxu0 %v983
        %v1061 = vpop.f32.mrf.mxu0
        %v1062 = vadd.f32 %v975, %v1061
        %v1063 = vpop.f32.mrf.mxu0
        %1064 = vdwg.mxu0
        %v1065 = vsub.f32 0.0, %v1052
        %v1066 = vsub.f32 0.0, %v1057
        %v1067 = vsub.f32 0.0, %v1062
        %v1068 = vmul.f32 %v1065, 1.442695
        %v1069 = vpow.pop %v1068
        %v1070 = vmul.f32 %v1066, 1.442695
        %v1071 = vpow.pop %v1070
        %v1072 = vmul.f32 %v1067, 1.442695
        %v1073 = vpow.pop %v1072
        %v1074 = vadd.f32 %v1069, 1.0
        %v1075 = vadd.f32 %v1071, 1.0
        %v1076 = vadd.f32 %v1073, 1.0
        %v1077 = vrcp.pop %v1074
        %v1078 = vmul.f32 1.0, %v1077
        %v1079 = vrcp.pop %v1075
        %v1080 = vmul.f32 1.0, %v1079
        %v1081 = vrcp.pop %v1076
        %v1082 = vmul.f32 1.0, %v1081
        %v1083 = vmul.f32 %v1052, %v1078
        %v1084 = vmul.f32 %v1057, %v1080
        %v1085 = vmul.f32 %v1062, %v1082
        %v1086 = vlaneseq
        %v1087 = vshrl.u32 %v1086, 7
        %v1088 = vsub.s32 0, %v1087
        %v1089 = vrot.slane %v969, %v1088
        %v1090 = vmul.f32 %v1083, %v1089
        %v1091 = vmul.f32 %v1084, %v1089
        %v1092 = vmul.f32 %v1085, %v1089
        %v1093 = vsel %vm760, %v1090, 0.0
        %1094 = vadd.xlane.f32.xlu0 %v1093
        %v1095 = vpop.xlane.xlu0 %1094
        %v1096 = vsel %vm760, %v1091, 0.0
        %1097 = vadd.xlane.f32.xlu0 %v1096
        %v1098 = vpop.xlane.xlu0 %1097
        %v1099 = vsel %vm760, %v1092, 0.0
        %1100 = vadd.xlane.f32.xlu0 %v1099
        %v1101 = vpop.xlane.xlu0 %1100
        %v1102 = vlaneseq
        %v1103 = vshrl.u32 %v1102, 7
        %v1104 = vsub.s32 0, %v1103
        %v1105 = vrot.slane %v970, %v1104
        %v1106 = vadd.f32 %v1095, %v1105
        %v1107 = vadd.f32 %v1098, %v1105
        %v1108 = vadd.f32 %v1101, %v1105
        %v1109 = vsub.f32 0.0, %v1106
        %v1110 = vsub.f32 0.0, %v1107
        %v1111 = vsub.f32 0.0, %v1108
        %v1112 = vmul.f32 %v1109, 1.442695
        %v1113 = vpow.pop %v1112
        %v1114 = vmul.f32 %v1110, 1.442695
        %v1115 = vpow.pop %v1114
        %v1116 = vmul.f32 %v1111, 1.442695
        %v1117 = vpow.pop %v1116
        %v1118 = vadd.f32 %v1113, 1.0
        %v1119 = vadd.f32 %v1115, 1.0
        %v1120 = vadd.f32 %v1117, 1.0
        %v1121 = vrcp.pop %v1118
        %v1122 = vmul.f32 1.0, %v1121
        %v1123 = vrcp.pop %v1119
        %v1124 = vmul.f32 1.0, %v1123
        %v1125 = vrcp.pop %v1120
        %v1126 = vmul.f32 1.0, %v1125
        %1128 = vset.pattern.permute.xlu0 0
        %1129 = vperm.xlu0 %1128, %v1122
        %v1130 = vpop.permute.xlu0 %1129
        %1133 = vset.pattern.permute.xlu0 0
        %1134 = vperm.xlu0 %1133, %v1124
        %v1135 = vpop.permute.xlu0 %1134
        %1138 = vset.pattern.permute.xlu0 0
        %1139 = vperm.xlu0 %1138, %v1126
        %v1140 = vpop.permute.xlu0 %1139
        %v1142 = vmul.f32 %v1083, %v1130
        %v1143 = vmul.f32 %v1084, %v1135
        %v1144 = vmul.f32 %v1085, %v1140
        %v1145 = vld [vmem:[%s545] sm:$0xff]
        %v1146 = vld [vmem:[%s545 + $0x8] sm:$0xff]
        %v1147 = vld [vmem:[%s545 + $0x10] sm:$0xff]
        %1149 = vset.pattern.permute.xlu0 0
        %1150 = vperm.xlu0 %1149, %v1145
        %v1151 = vpop.permute.xlu0 %1150
        %1154 = vset.pattern.permute.xlu0 0
        %1155 = vperm.xlu0 %1154, %v1146
        %v1156 = vpop.permute.xlu0 %1155
        %1159 = vset.pattern.permute.xlu0 0
        %1160 = vperm.xlu0 %1159, %v1147
        %v1161 = vpop.permute.xlu0 %1160
        %v1163 = vmul.f32 %v1142, %v1151
        %v1164 = vmul.f32 %v1143, %v1156
        %v1165 = vmul.f32 %v1144, %v1161
        %v1166 = vld [vmem:[#allocation4] sm:$0xff]
        %vm1167 = vcmask 195584
        %v1169 = vsel %vm1167, %v1166, 0
        %1171 = vmatprep.subr.mxu0 0.0
        %1172 = vmatpush1.msra.mxu0 0.0
        %1173 = vmatprep.subr.mxu0 0.0
        %1174 = vmatpush1.msra.mxu0 0.0
        %1175 = vmatprep.subr.mxu0 0.0
        %1176 = vmatpush1.msra.mxu0 0.0
        %1177 = vmatprep.subr.mxu0 0.0
        %1178 = vmatpush1.msra.mxu0 0.0
        %1179 = vmatprep.subr.mxu0 0.0
        %1180 = vmatpush1.msra.mxu0 0.0
        %1181 = vmatprep.subr.mxu0 0.0
        %1182 = vmatpush1.msra.mxu0 0.0
        %1183 = vmatprep.subr.mxu0 0.0
        %1184 = vmatpush1.msra.mxu0 0.0
        %1185 = vmatprep.subr.mxu0 0.0
        %1186 = vmatpush1.msra.mxu0 0.0
        %1187 = vmatprep.subr.mxu0 0.0
        %1188 = vmatpush1.msra.mxu0 0.0
        %1189 = vmatprep.subr.mxu0 0.0
        %1190 = vmatpush1.msra.mxu0 0.0
        %1191 = vmatprep.subr.mxu0 0.0
        %1192 = vmatpush1.msra.mxu0 0.0
        %1193 = vmatprep.subr.mxu0 0.0
        %1194 = vmatpush1.msra.mxu0 0.0
        %1195 = vmatprep.subr.mxu0 0.0
        %1196 = vmatpush1.msra.mxu0 0.0
        %1197 = vmatprep.subr.mxu0 0.0
        %1198 = vmatpush1.msra.mxu0 %v1165
        %1199 = vmatprep.subr.mxu0 0.0
        %1200 = vmatpush1.msra.mxu0 %v1164
        %1201 = vmatprep.subr.mxu0 0.0
        %1202 = vmatpush1.msra.mxu0 %v1163
        %1203 = vmatprep.subr.mxu0 0.0
        %1204 = vmatpush2.msra.mxu0 0.0
        %1205 = vmatprep.subr.mxu0 0.0
        %1206 = vmatpush2.msra.mxu0 0.0
        %1207 = vmatprep.subr.mxu0 0.0
        %1208 = vmatpush2.msra.mxu0 0.0
        %1209 = vmatprep.subr.mxu0 0.0
        %1210 = vmatpush2.msra.mxu0 0.0
        %1211 = vmatprep.subr.mxu0 0.0
        %1212 = vmatpush2.msra.mxu0 0.0
        %1213 = vmatprep.subr.mxu0 0.0
        %1214 = vmatpush2.msra.mxu0 0.0
        %1215 = vmatprep.subr.mxu0 0.0
        %1216 = vmatpush2.msra.mxu0 0.0
        %1217 = vmatprep.subr.mxu0 0.0
        %1218 = vmatpush2.msra.mxu0 0.0
        %1219 = vmatprep.subr.mxu0 0.0
        %1220 = vmatpush2.msra.mxu0 0.0
        %1221 = vmatprep.subr.mxu0 0.0
        %1222 = vmatpush2.msra.mxu0 0.0
        %1223 = vmatprep.subr.mxu0 0.0
        %1224 = vmatpush2.msra.mxu0 0.0
        %1225 = vmatprep.subr.mxu0 0.0
        %1226 = vmatpush2.msra.mxu0 0.0
        %1227 = vmatprep.subr.mxu0 0.0
        %1228 = vmatpush2.msra.mxu0 0.0
        %1229 = vmatprep.subr.mxu0 0.0
        %1230 = vmatpush2.msra.mxu0 0.0
        %1231 = vmatprep.subr.mxu0 0.0
        %1232 = vmatpush2.msra.mxu0 0.0
        %1233 = vmatprep.subr.mxu0 0.0
        %1234 = vmatpush2.msra.mxu0 0.0
        %1235 = vmatprep.mubr.f32.mxu0 0.0
        %1236 = vmatmul.mubr.f32.gmra.mxu0 %v1169
        %v1237 = vpop.f32.mrf.mxu0
        %v1238 = vadd.f32 0.0, %v1237
        %v1239 = vpop.f32.mrf.mxu0
        %1240 = vdwg.mxu0
        %1241 = vst.msk [vmem:[#allocation6] sm:$0xff] %vm760, %v755
        %1243 = vrot.lane.b32.xlu0 %v1238, 32
        %v1244 = vpop.permute.xlu0 %1243
        %vm1246 = vcmask 523520
        %1247 = vst.msk [vmem:[#allocation6] sm:$0xff] %vm1246, %v1244
        %v1248 = vld [vmem:[%s567 + $0x30] sm:$0xff]
        %v1249 = vld [vmem:[%s567 + $0x38] sm:$0xff]
        %v1250 = vld [vmem:[%s567 + $0x40] sm:$0xff]
        %v1251 = vld [vmem:[%s567 + $0x48] sm:$0xff]
        %v1252 = vld [vmem:[%s567 + $0x50] sm:$0xff]
        %v1253 = vld [vmem:[%s567 + $0x58] sm:$0xff]
        %v1254 = vld [vmem:[%s567 + $0x60] sm:$0xff]
        %v1255 = vld [vmem:[%s567 + $0x68] sm:$0xff]
        %v1256 = vld [vmem:[%s567 + $0x70] sm:$0x3f]
        %v1257 = vld [vmem:[#allocation6] sm:$0xff]
        %vm1258 = vcmask 572416
        %v1260 = vsel %vm1258, %v1257, 0
        %vm1262 = vcmask 1045504
        %v1264 = vsel %vm1262, %v1256, 0
        %1266 = vmatprep.subr.mxu0 0.0
        %1267 = vmatpush1.msra.mxu0 0.0
        %1268 = vmatprep.subr.mxu0 0.0
        %1269 = vmatpush1.msra.mxu0 0.0
        %1270 = vmatprep.subr.mxu0 0.0
        %1271 = vmatpush1.msra.mxu0 0.0
        %1272 = vmatprep.subr.mxu0 0.0
        %1273 = vmatpush1.msra.mxu0 0.0
        %1274 = vmatprep.subr.mxu0 0.0
        %1275 = vmatpush1.msra.mxu0 0.0
        %1276 = vmatprep.subr.mxu0 0.0
        %1277 = vmatpush1.msra.mxu0 0.0
        %1278 = vmatprep.subr.mxu0 0.0
        %1279 = vmatpush1.msra.mxu0 0.0
        %1280 = vmatprep.subr.mxu0 0.0
        %1281 = vmatpush1.msra.mxu0 %v1264
        %1282 = vmatprep.subr.mxu0 0.0
        %1283 = vmatpush1.msra.mxu0 %v1255
        %1284 = vmatprep.subr.mxu0 0.0
        %1285 = vmatpush1.msra.mxu0 %v1254
        %1286 = vmatprep.subr.mxu0 0.0
        %1287 = vmatpush1.msra.mxu0 %v1253
        %1288 = vmatprep.subr.mxu0 0.0
        %1289 = vmatpush1.msra.mxu0 %v1252
        %1290 = vmatprep.subr.mxu0 0.0
        %1291 = vmatpush1.msra.mxu0 %v1251
        %1292 = vmatprep.subr.mxu0 0.0
        %1293 = vmatpush1.msra.mxu0 %v1250
        %1294 = vmatprep.subr.mxu0 0.0
        %1295 = vmatpush1.msra.mxu0 %v1249
        %1296 = vmatprep.subr.mxu0 0.0
        %1297 = vmatpush1.msra.mxu0 %v1248
        %1298 = vmatprep.subr.mxu0 0.0
        %1299 = vmatpush2.msra.mxu0 0.0
        %1300 = vmatprep.subr.mxu0 0.0
        %1301 = vmatpush2.msra.mxu0 0.0
        %1302 = vmatprep.subr.mxu0 0.0
        %1303 = vmatpush2.msra.mxu0 0.0
        %1304 = vmatprep.subr.mxu0 0.0
        %1305 = vmatpush2.msra.mxu0 0.0
        %1306 = vmatprep.subr.mxu0 0.0
        %1307 = vmatpush2.msra.mxu0 0.0
        %1308 = vmatprep.subr.mxu0 0.0
        %1309 = vmatpush2.msra.mxu0 0.0
        %1310 = vmatprep.subr.mxu0 0.0
        %1311 = vmatpush2.msra.mxu0 0.0
        %1312 = vmatprep.subr.mxu0 0.0
        %1313 = vmatpush2.msra.mxu0 0.0
        %1314 = vmatprep.subr.mxu0 0.0
        %1315 = vmatpush2.msra.mxu0 0.0
        %1316 = vmatprep.subr.mxu0 0.0
        %1317 = vmatpush2.msra.mxu0 0.0
        %1318 = vmatprep.subr.mxu0 0.0
        %1319 = vmatpush2.msra.mxu0 0.0
        %1320 = vmatprep.subr.mxu0 0.0
        %1321 = vmatpush2.msra.mxu0 0.0
        %1322 = vmatprep.subr.mxu0 0.0
        %1323 = vmatpush2.msra.mxu0 0.0
        %1324 = vmatprep.subr.mxu0 0.0
        %1325 = vmatpush2.msra.mxu0 0.0
        %1326 = vmatprep.subr.mxu0 0.0
        %1327 = vmatpush2.msra.mxu0 0.0
        %1328 = vmatprep.subr.mxu0 0.0
        %1329 = vmatpush2.msra.mxu0 0.0
        %1330 = vmatprep.mubr.f32.mxu0 0.0
        %1331 = vmatmul.mubr.f32.gmra.mxu0 %v1260
        %v1332 = vpop.f32.mrf.mxu0
        %v1333 = vadd.f32 0.0, %v1332
        %v1334 = vpop.f32.mrf.mxu0
        %1335 = vdwg.mxu0
        %v1336 = vsub.f32 0.0, %v1333
        %v1337 = vmul.f32 %v1336, 1.442695
        %v1338 = vpow.pop %v1337
        %v1339 = vadd.f32 %v1338, 1.0
        %v1340 = vrcp.pop %v1339
        %v1341 = vmul.f32 1.0, %v1340
        %v1342 = vmul.f32 %v1333, %v1341
        %v1343 = vld [vmem:[%s567 + $0x78] sm:$0xff]
        %v1344 = vld [vmem:[%s567 + $0x80] sm:$0xff]
        %v1345 = vld [vmem:[%s567 + $0x88] sm:$0xff]
        %v1346 = vld [vmem:[%s567 + $0x90] sm:$0xff]
        %v1348 = vsel %vm760, %v1342, 0
        %1350 = vmatprep.subr.mxu0 0.0
        %1351 = vmatpush1.msra.mxu0 0.0
        %1352 = vmatprep.subr.mxu0 0.0
        %1353 = vmatpush1.msra.mxu0 0.0
        %1354 = vmatprep.subr.mxu0 0.0
        %1355 = vmatpush1.msra.mxu0 0.0
        %1356 = vmatprep.subr.mxu0 0.0
        %1357 = vmatpush1.msra.mxu0 0.0
        %1358 = vmatprep.subr.mxu0 0.0
        %1359 = vmatpush1.msra.mxu0 0.0
        %1360 = vmatprep.subr.mxu0 0.0
        %1361 = vmatpush1.msra.mxu0 0.0
        %1362 = vmatprep.subr.mxu0 0.0
        %1363 = vmatpush1.msra.mxu0 0.0
        %1364 = vmatprep.subr.mxu0 0.0
        %1365 = vmatpush1.msra.mxu0 0.0
        %1366 = vmatprep.subr.mxu0 0.0
        %1367 = vmatpush1.msra.mxu0 0.0
        %1368 = vmatprep.subr.mxu0 0.0
        %1369 = vmatpush1.msra.mxu0 0.0
        %1370 = vmatprep.subr.mxu0 0.0
        %1371 = vmatpush1.msra.mxu0 0.0
        %1372 = vmatprep.subr.mxu0 0.0
        %1373 = vmatpush1.msra.mxu0 0.0
        %1374 = vmatprep.subr.mxu0 0.0
        %1375 = vmatpush1.msra.mxu0 %v1346
        %1376 = vmatprep.subr.mxu0 0.0
        %1377 = vmatpush1.msra.mxu0 %v1345
        %1378 = vmatprep.subr.mxu0 0.0
        %1379 = vmatpush1.msra.mxu0 %v1344
        %1380 = vmatprep.subr.mxu0 0.0
        %1381 = vmatpush1.msra.mxu0 %v1343
        %1382 = vmatprep.subr.mxu0 0.0
        %1383 = vmatpush2.msra.mxu0 0.0
        %1384 = vmatprep.subr.mxu0 0.0
        %1385 = vmatpush2.msra.mxu0 0.0
        %1386 = vmatprep.subr.mxu0 0.0
        %1387 = vmatpush2.msra.mxu0 0.0
        %1388 = vmatprep.subr.mxu0 0.0
        %1389 = vmatpush2.msra.mxu0 0.0
        %1390 = vmatprep.subr.mxu0 0.0
        %1391 = vmatpush2.msra.mxu0 0.0
        %1392 = vmatprep.subr.mxu0 0.0
        %1393 = vmatpush2.msra.mxu0 0.0
        %1394 = vmatprep.subr.mxu0 0.0
        %1395 = vmatpush2.msra.mxu0 0.0
        %1396 = vmatprep.subr.mxu0 0.0
        %1397 = vmatpush2.msra.mxu0 0.0
        %1398 = vmatprep.subr.mxu0 0.0
        %1399 = vmatpush2.msra.mxu0 0.0
        %1400 = vmatprep.subr.mxu0 0.0
        %1401 = vmatpush2.msra.mxu0 0.0
        %1402 = vmatprep.subr.mxu0 0.0
        %1403 = vmatpush2.msra.mxu0 0.0
        %1404 = vmatprep.subr.mxu0 0.0
        %1405 = vmatpush2.msra.mxu0 0.0
        %1406 = vmatprep.subr.mxu0 0.0
        %1407 = vmatpush2.msra.mxu0 0.0
        %1408 = vmatprep.subr.mxu0 0.0
        %1409 = vmatpush2.msra.mxu0 0.0
        %1410 = vmatprep.subr.mxu0 0.0
        %1411 = vmatpush2.msra.mxu0 0.0
        %1412 = vmatprep.subr.mxu0 0.0
        %1413 = vmatpush2.msra.mxu0 0.0
        %1414 = vmatprep.mubr.f32.mxu0 0.0
        %1415 = vmatmul.mubr.f32.gmra.mxu0 %v1348
        %v1416 = vpop.f32.mrf.mxu0
        %v1417 = vadd.f32 0.0, %v1416
        %v1418 = vpop.f32.mrf.mxu0
        %1419 = vdwg.mxu0
        %v1420 = vadd.f32 %v755, %v1417
        %v1421 = vlaneseq
        %v1422 = vshrl.u32 %v1421, 7
        %v1423 = vsub.s32 0, %v1422
        %v1424 = vrot.slane %v971, %v1423
        %v1425 = vadd.f32 %v1420, %v1424
        %1426 = vst.msk [vmem:[#allocation2] sm:$0xff] %vm760, %v1425
        %p1427 = scmp.eq.s32.totalorder %s30, 2
        // Predicated region
        $region69: #{tpu_custom_call.1} parent=63 // pred_check
          %p1428 = pneg %p1427
        $region70: #{tpu_custom_call.1} parent=63 // pred_check_branch
          %1430 = sbr.rel (%p1428) target = $region72
        $region71: #{tpu_custom_call.1} parent=63 // pred_region
          %v1431 = vld [vmem:[%s572] sm:$0xff]
          %v1432 = vld [vmem:[%s572 + $0x8] sm:$0xff]
          %v1433 = vld [vmem:[%s572 + $0x10] sm:$0xff]
          %v1434 = vld [vmem:[%s572 + $0x18] sm:$0xff]
          %v1435 = vld [vmem:[%s572 + $0x40] sm:$0x1]
          %v1436 = vlaneseq
          %v1437 = vshrl.u32 %v1436, 7
          %v1438 = vsub.s32 0, %v1437
          %v1439 = vrot.slane %v1435, %v1438
          %v1441 = vsel %vm760, %v1425, 0
          %1443 = vmatprep.subr.mxu0 0.0
          %1444 = vmatpush1.msra.mxu0 0.0
          %1445 = vmatprep.subr.mxu0 0.0
          %1446 = vmatpush1.msra.mxu0 0.0
          %1447 = vmatprep.subr.mxu0 0.0
          %1448 = vmatpush1.msra.mxu0 0.0
          %1449 = vmatprep.subr.mxu0 0.0
          %1450 = vmatpush1.msra.mxu0 0.0
          %1451 = vmatprep.subr.mxu0 0.0
          %1452 = vmatpush1.msra.mxu0 0.0
          %1453 = vmatprep.subr.mxu0 0.0
          %1454 = vmatpush1.msra.mxu0 0.0
          %1455 = vmatprep.subr.mxu0 0.0
          %1456 = vmatpush1.msra.mxu0 0.0
          %1457 = vmatprep.subr.mxu0 0.0
          %1458 = vmatpush1.msra.mxu0 0.0
          %1459 = vmatprep.subr.mxu0 0.0
          %1460 = vmatpush1.msra.mxu0 0.0
          %1461 = vmatprep.subr.mxu0 0.0
          %1462 = vmatpush1.msra.mxu0 0.0
          %1463 = vmatprep.subr.mxu0 0.0
          %1464 = vmatpush1.msra.mxu0 0.0
          %1465 = vmatprep.subr.mxu0 0.0
          %1466 = vmatpush1.msra.mxu0 0.0
          %1467 = vmatprep.subr.mxu0 0.0
          %1468 = vmatpush1.msra.mxu0 %v1434
          %1469 = vmatprep.subr.mxu0 0.0
          %1470 = vmatpush1.msra.mxu0 %v1433
          %1471 = vmatprep.subr.mxu0 0.0
          %1472 = vmatpush1.msra.mxu0 %v1432
          %1473 = vmatprep.subr.mxu0 0.0
          %1474 = vmatpush1.msra.mxu0 %v1431
          %1475 = vmatprep.subr.mxu0 0.0
          %1476 = vmatpush2.msra.mxu0 0.0
          %1477 = vmatprep.subr.mxu0 0.0
          %1478 = vmatpush2.msra.mxu0 0.0
          %1479 = vmatprep.subr.mxu0 0.0
          %1480 = vmatpush2.msra.mxu0 0.0
          %1481 = vmatprep.subr.mxu0 0.0
          %1482 = vmatpush2.msra.mxu0 0.0
          %1483 = vmatprep.subr.mxu0 0.0
          %1484 = vmatpush2.msra.mxu0 0.0
          %1485 = vmatprep.subr.mxu0 0.0
          %1486 = vmatpush2.msra.mxu0 0.0
          %1487 = vmatprep.subr.mxu0 0.0
          %1488 = vmatpush2.msra.mxu0 0.0
          %1489 = vmatprep.subr.mxu0 0.0
          %1490 = vmatpush2.msra.mxu0 0.0
          %1491 = vmatprep.subr.mxu0 0.0
          %1492 = vmatpush2.msra.mxu0 0.0
          %1493 = vmatprep.subr.mxu0 0.0
          %1494 = vmatpush2.msra.mxu0 0.0
          %1495 = vmatprep.subr.mxu0 0.0
          %1496 = vmatpush2.msra.mxu0 0.0
          %1497 = vmatprep.subr.mxu0 0.0
          %1498 = vmatpush2.msra.mxu0 0.0
          %1499 = vmatprep.subr.mxu0 0.0
          %1500 = vmatpush2.msra.mxu0 0.0
          %1501 = vmatprep.subr.mxu0 0.0
          %1502 = vmatpush2.msra.mxu0 0.0
          %1503 = vmatprep.subr.mxu0 0.0
          %1504 = vmatpush2.msra.mxu0 0.0
          %1505 = vmatprep.subr.mxu0 0.0
          %1506 = vmatpush2.msra.mxu0 0.0
          %1507 = vmatprep.mubr.f32.mxu0 0.0
          %1508 = vmatmul.mubr.f32.gmra.mxu0 %v1441
          %v1509 = vpop.f32.mrf.mxu0
          %v1510 = vadd.f32 %v1439, %v1509
          %v1511 = vpop.f32.mrf.mxu0
          %1512 = vdwg.mxu0
          %v1513 = vsub.f32 0.0, %v1510
          %v1514 = vmul.f32 %v1513, 1.442695
          %v1515 = vpow.pop %v1514
          %v1516 = vadd.f32 %v1515, 1.0
          %v1517 = vrcp.pop %v1516
          %v1518 = vmul.f32 1.0, %v1517
          %v1519 = vmul.f32 %v1510, %v1518
          %v1520 = vld [vmem:[%s572 + $0x20] sm:$0xff]
          %v1521 = vld [vmem:[%s572 + $0x28] sm:$0xff]
          %v1522 = vld [vmem:[%s572 + $0x30] sm:$0xff]
          %v1523 = vld [vmem:[%s572 + $0x38] sm:$0xff]
          %v1524 = vld [vmem:[%s572 + $0x41] sm:$0x1]
          %v1525 = vlaneseq
          %v1526 = vshrl.u32 %v1525, 7
          %v1527 = vsub.s32 0, %v1526
          %v1528 = vrot.slane %v1524, %v1527
          %v1530 = vsel %vm760, %v1519, 0
          %1532 = vmatprep.subr.mxu0 0.0
          %1533 = vmatpush1.msra.mxu0 0.0
          %1534 = vmatprep.subr.mxu0 0.0
          %1535 = vmatpush1.msra.mxu0 0.0
          %1536 = vmatprep.subr.mxu0 0.0
          %1537 = vmatpush1.msra.mxu0 0.0
          %1538 = vmatprep.subr.mxu0 0.0
          %1539 = vmatpush1.msra.mxu0 0.0
          %1540 = vmatprep.subr.mxu0 0.0
          %1541 = vmatpush1.msra.mxu0 0.0
          %1542 = vmatprep.subr.mxu0 0.0
          %1543 = vmatpush1.msra.mxu0 0.0
          %1544 = vmatprep.subr.mxu0 0.0
          %1545 = vmatpush1.msra.mxu0 0.0
          %1546 = vmatprep.subr.mxu0 0.0
          %1547 = vmatpush1.msra.mxu0 0.0
          %1548 = vmatprep.subr.mxu0 0.0
          %1549 = vmatpush1.msra.mxu0 0.0
          %1550 = vmatprep.subr.mxu0 0.0
          %1551 = vmatpush1.msra.mxu0 0.0
          %1552 = vmatprep.subr.mxu0 0.0
          %1553 = vmatpush1.msra.mxu0 0.0
          %1554 = vmatprep.subr.mxu0 0.0
          %1555 = vmatpush1.msra.mxu0 0.0
          %1556 = vmatprep.subr.mxu0 0.0
          %1557 = vmatpush1.msra.mxu0 %v1523
          %1558 = vmatprep.subr.mxu0 0.0
          %1559 = vmatpush1.msra.mxu0 %v1522
          %1560 = vmatprep.subr.mxu0 0.0
          %1561 = vmatpush1.msra.mxu0 %v1521
          %1562 = vmatprep.subr.mxu0 0.0
          %1563 = vmatpush1.msra.mxu0 %v1520
          %1564 = vmatprep.subr.mxu0 0.0
          %1565 = vmatpush2.msra.mxu0 0.0
          %1566 = vmatprep.subr.mxu0 0.0
          %1567 = vmatpush2.msra.mxu0 0.0
          %1568 = vmatprep.subr.mxu0 0.0
          %1569 = vmatpush2.msra.mxu0 0.0
          %1570 = vmatprep.subr.mxu0 0.0
          %1571 = vmatpush2.msra.mxu0 0.0
          %1572 = vmatprep.subr.mxu0 0.0
          %1573 = vmatpush2.msra.mxu0 0.0
          %1574 = vmatprep.subr.mxu0 0.0
          %1575 = vmatpush2.msra.mxu0 0.0
          %1576 = vmatprep.subr.mxu0 0.0
          %1577 = vmatpush2.msra.mxu0 0.0
          %1578 = vmatprep.subr.mxu0 0.0
          %1579 = vmatpush2.msra.mxu0 0.0
          %1580 = vmatprep.subr.mxu0 0.0
          %1581 = vmatpush2.msra.mxu0 0.0
          %1582 = vmatprep.subr.mxu0 0.0
          %1583 = vmatpush2.msra.mxu0 0.0
          %1584 = vmatprep.subr.mxu0 0.0
          %1585 = vmatpush2.msra.mxu0 0.0
          %1586 = vmatprep.subr.mxu0 0.0
          %1587 = vmatpush2.msra.mxu0 0.0
          %1588 = vmatprep.subr.mxu0 0.0
          %1589 = vmatpush2.msra.mxu0 0.0
          %1590 = vmatprep.subr.mxu0 0.0
          %1591 = vmatpush2.msra.mxu0 0.0
          %1592 = vmatprep.subr.mxu0 0.0
          %1593 = vmatpush2.msra.mxu0 0.0
          %1594 = vmatprep.subr.mxu0 0.0
          %1595 = vmatpush2.msra.mxu0 0.0
          %1596 = vmatprep.mubr.f32.mxu0 0.0
          %1597 = vmatmul.mubr.f32.gmra.mxu0 %v1530
          %v1598 = vpop.f32.mrf.mxu0
          %v1599 = vadd.f32 %v1528, %v1598
          %v1600 = vpop.f32.mrf.mxu0
          %1601 = vdwg.mxu0
          %v1602 = vld [vmem:[%s549] sm:$0xff]
          %1604 = vset.pattern.permute.xlu0 0
          %1605 = vperm.xlu0 %1604, %v1602
          %v1606 = vpop.permute.xlu0 %1605
          %v1608 = vmul.f32 %v1599, %v1606
          %v1609 = vlaneseq
          %v1610 = vand.u32 %v1609, 127
          %v1611 = vlaneseq
          %v1612 = vshrl.u32 %v1611, 7
          %v1613 = vmul.u32 %v1612, 4
          %vm1614 = vcmp.ge.s32.totalorder %v1610, %v1613
          %v1615 = vadd.s32 %v1613, 4
          %vm1616 = vcmp.lt.s32.totalorder %v1610, %v1615
          %vm1617 = vmand %vm1614, %vm1616
          %v1618 = vsel %vm1617, 1, 0
          %v1619 = vcvt.s32.f32 %v1618
          %vm1620 = vcmask 64512
          %v1622 = vsel %vm1620, %v1619, 0
          %1624 = vmatprep.subr.mxu0 0.0
          %1625 = vmatpush1.msra.mxu0 0.0
          %1626 = vmatprep.subr.mxu0 0.0
          %1627 = vmatpush1.msra.mxu0 0.0
          %1628 = vmatprep.subr.mxu0 0.0
          %1629 = vmatpush1.msra.mxu0 0.0
          %1630 = vmatprep.subr.mxu0 0.0
          %1631 = vmatpush1.msra.mxu0 0.0
          %1632 = vmatprep.subr.mxu0 0.0
          %1633 = vmatpush1.msra.mxu0 0.0
          %1634 = vmatprep.subr.mxu0 0.0
          %1635 = vmatpush1.msra.mxu0 0.0
          %1636 = vmatprep.subr.mxu0 0.0
          %1637 = vmatpush1.msra.mxu0 0.0
          %1638 = vmatprep.subr.mxu0 0.0
          %1639 = vmatpush1.msra.mxu0 0.0
          %1640 = vmatprep.subr.mxu0 0.0
          %1641 = vmatpush1.msra.mxu0 0.0
          %1642 = vmatprep.subr.mxu0 0.0
          %1643 = vmatpush1.msra.mxu0 0.0
          %1644 = vmatprep.subr.mxu0 0.0
          %1645 = vmatpush1.msra.mxu0 0.0
          %1646 = vmatprep.subr.mxu0 0.0
          %1647 = vmatpush1.msra.mxu0 0.0
          %1648 = vmatprep.subr.mxu0 0.0
          %1649 = vmatpush1.msra.mxu0 0.0
          %1650 = vmatprep.subr.mxu0 0.0
          %1651 = vmatpush1.msra.mxu0 0.0
          %1652 = vmatprep.subr.mxu0 0.0
          %1653 = vmatpush1.msra.mxu0 0.0
          %1654 = vmatprep.subr.mxu0 0.0
          %1655 = vmatpush1.msra.mxu0 %v1608
          %1656 = vmatprep.subr.mxu0 0.0
          %1657 = vmatpush2.msra.mxu0 0.0
          %1658 = vmatprep.subr.mxu0 0.0
          %1659 = vmatpush2.msra.mxu0 0.0
          %1660 = vmatprep.subr.mxu0 0.0
          %1661 = vmatpush2.msra.mxu0 0.0
          %1662 = vmatprep.subr.mxu0 0.0
          %1663 = vmatpush2.msra.mxu0 0.0
          %1664 = vmatprep.subr.mxu0 0.0
          %1665 = vmatpush2.msra.mxu0 0.0
          %1666 = vmatprep.subr.mxu0 0.0
          %1667 = vmatpush2.msra.mxu0 0.0
          %1668 = vmatprep.subr.mxu0 0.0
          %1669 = vmatpush2.msra.mxu0 0.0
          %1670 = vmatprep.subr.mxu0 0.0
          %1671 = vmatpush2.msra.mxu0 0.0
          %1672 = vmatprep.subr.mxu0 0.0
          %1673 = vmatpush2.msra.mxu0 0.0
          %1674 = vmatprep.subr.mxu0 0.0
          %1675 = vmatpush2.msra.mxu0 0.0
          %1676 = vmatprep.subr.mxu0 0.0
          %1677 = vmatpush2.msra.mxu0 0.0
          %1678 = vmatprep.subr.mxu0 0.0
          %1679 = vmatpush2.msra.mxu0 0.0
          %1680 = vmatprep.subr.mxu0 0.0
          %1681 = vmatpush2.msra.mxu0 0.0
          %1682 = vmatprep.subr.mxu0 0.0
          %1683 = vmatpush2.msra.mxu0 0.0
          %1684 = vmatprep.subr.mxu0 0.0
          %1685 = vmatpush2.msra.mxu0 0.0
          %1686 = vmatprep.subr.mxu0 0.0
          %1687 = vmatpush2.msra.mxu0 0.0
          %1688 = vmatprep.mubr.f32.mxu0 0.0
          %1689 = vmatmul.mubr.f32.gmra.mxu0 %v1622
          %v1690 = vpop.f32.mrf.mxu0
          %v1691 = vadd.f32 0.0, %v1690
          %v1692 = vpop.f32.mrf.mxu0
          %1693 = vdwg.mxu0
          %vm1694 = vcmask 254976
          %1695 = vst.msk [vmem:[%s523] sm:$0x3] %vm1694, %v1691
        $region72: #{tpu_custom_call.1} parent=63 // pred_fallthru
          _
        %s1696 = sand.u32 %s325, 1
        %s1697 = scalar_lea.sflag [#allocation8], %s1696
        %s1698 = sand.u32 %s325, 1
        %s1699 = smul.addr %s1698, 2
        %s1700 = scalar_lea.vmem [#allocation7], %s1699
        // Predicated region
        $region73: #{tpu_custom_call.1} parent=63 // pred_check
          %p1701 = pneg %p335
        $region74: #{tpu_custom_call.1} parent=63 // pred_check_branch
          %1703 = sbr.rel (%p1701) target = $region76
        $region75: #{tpu_custom_call.1} parent=63 // pred_region
          %s1705 = ssub.s32 32, 32
          %1706 = vsyncadd %s1697, %s1705
          %s1707 = smul.addr %s29, 32
          %s1708 = scalar_lea.hbm %s11, %s1707
          %s1710 = sshll.u32 %s1700, 4
          %s1711 = int_to_ptr.vmem [resolvable:$true] %s1710
          %1713 = dma.vmem_to_hbm [thread:$0]  %s1711, 32, %s1708, %s1697
        $region76: #{tpu_custom_call.1} parent=63 // pred_fallthru
          _
      $region64: #{tpu_custom_call.1} parent=5 // pred_fallthru
        _
      %p1714 = scmp.le.s32.totalorder 2, %s20
      // Predicated region
      $region77: #{tpu_custom_call.1} parent=5 // pred_check
        %p1715 = pneg %p1714
      $region78: #{tpu_custom_call.1} parent=5 // pred_check_branch
        %1717 = sbr.rel (%p1715) target = $region80
      $region79: #{tpu_custom_call.1} parent=5 // pred_region
        %s1718 = ssub.s32 %s20, 2
        // Predicated region
        $region81: #{tpu_custom_call.1} parent=79 // pred_check
          %p1719 = pneg %p341
        $region82: #{tpu_custom_call.1} parent=79 // pred_check_branch
          %1721 = sbr.rel (%p1719) target = $region84
        $region83: #{tpu_custom_call.1} parent=79 // pred_region
          %s1722 = sand.u32 %s326, 1
          %s1723 = scalar_lea.sflag [#allocation8], %s1722
          %s1724 = sand.u32 %s326, 1
          %s1725 = smul.addr %s1724, 2
          %s1726 = scalar_lea.vmem [#allocation7], %s1725
          %1727 = dma.done %s1723, 32
        $region84: #{tpu_custom_call.1} parent=79 // pred_fallthru
          _
      $region80: #{tpu_custom_call.1} parent=5 // pred_fallthru
        _
    $region6: #{tpu_custom_call.1} parent=1 // loop_footer
      %s24 = sadd.s32 1, %s20
    $region7: #{tpu_custom_call.1} parent=1 // loop_footer_branch
      %19 = sbr.rel target = $region3
    $region8: #{tpu_custom_call.1} parent=1 // loop_exit
      _
    %1728 = vsyncpa [#allocation8], 1
    %s1729 = scalar_lea.sflag [#allocation8], 1
    %1730 = vsyncpa %s1729, 1

</llo_original>
